<compile_context>
chip_gen: v6e
topology: v6e:2x2x1
jax: 0.10.0
libtpu: 0.0.40
codegen_flags: <defaults>
</compile_context>

<pallas_src>
import math

import jax
import jax.numpy as jnp
from jax import lax
from jax.experimental import pallas as pl
from jax.experimental.pallas import tpu as pltpu


LANE = 128


def _round_up(x, m):
    return ((x + m - 1) // m) * m


def _pad2d(x, rows, cols, fill=0.0):
    r, c = x.shape
    return jnp.pad(x, ((0, rows - r), (0, cols - c)), constant_values=fill)


def _pick_vmem_limit(n_pad, f_pad, h_pad, c_pad, tm, adj_itemsize):
    """Request what the kernel actually needs, clamped to this gen's VMEM."""
    scratch = (2 * n_pad * f_pad * 2            # bf16 ping-pong propagated feats
               + n_pad * f_pad * 4)             # f32 psum (+ hop-count lane)
    blocks = 2 * (tm * n_pad * adj_itemsize     # adjacency slab (double buffered)
                  + tm * LANE * 4               # inv_deg block (lane padded)
                  + tm * f_pad * 4              # feature block
                  + tm * c_pad * 4)             # output block
    consts = 2 * (8 * f_pad * 4
                  + (f_pad * h_pad + h_pad * h_pad + h_pad * c_pad) * 2
                  + 8 * (2 * h_pad + c_pad) * 4)
    need = scratch + blocks + consts
    limit = max(int(need * 1.25) + (2 << 20), 32 << 20)
    try:
        cap = int(pltpu.get_tpu_info().vmem_capacity_bytes)   # 64 MiB v7x, 128 MiB v5e/v6e
    except Exception:
        cap = 128 << 20
    return max(16 << 20, min(limit, cap - (4 << 20)))


# ---------------------------------------------------------------------------
# Fused NDLS kernel: propagation + online hop selection + combine + MLP.
# ---------------------------------------------------------------------------
def ndls_fused(adj_p, inv_p, feat_p, nfi_p, w1, b1, w2, b2, w3, b3,
               *, k1, eps1, alpha, tm, vmem_limit_bytes):
    n_pad = adj_p.shape[0]
    f_pad = feat_p.shape[1]
    h_pad = w1.shape[1]
    c_pad = w3.shape[1]
    assert k1 >= 2
    assert tm % 32 == 0 and n_pad % tm == 0
    m_tiles = n_pad // tm
    # Only hops j = 0 .. k1-2 influence the output (the reference computes
    # feature_list[k1-1] but never consumes it), so the hop grid has k1-1 steps.
    n_hops = k1 - 1
    last = n_hops - 1
    eps_sq = float(eps1) * float(eps1)
    alpha_f = float(alpha)

    def kernel(adj_ref, inv_ref, feat_ref, nfi_ref,
               w1_ref, b1_ref, w2_ref, b2_ref, w3_ref, b3_ref,
               out_ref,
               prop_ref, psum_ref):
        j = pl.program_id(0)                    # hop index   (sequential)
        m = pl.program_id(1)                    # node-row tile (sequential)
        row0 = m * tm
        rows = pl.ds(pl.multiple_of(row0, 8), tm)
        jf = j.astype(jnp.float32)

        # one-hot of the hop-count lane (last, zero-padded feature column)
        cnt_onehot = (lax.broadcasted_iota(jnp.int32, (tm, f_pad), 1)
                      == (f_pad - 1)).astype(jnp.float32)

        def process(cur):
            """Shared per-hop body; cur = feature_list[j] rows of this tile (f32)."""
            # Stash this hop (bf16) as the next hop's matmul RHS — only if a
            # next hop exists.
            @pl.when(j < last)
            def _():
                woff = pl.multiple_of((j % 2) * n_pad + row0, 16)
                prop_ref[pl.ds(woff, tm), :] = cur.astype(jnp.bfloat16)

            # ---- online hop selection + smoothing sum --------------------
            # count (== hops so far) lives in psum's last lane, so the whole
            # stat update is one lane-dense (tm, f_pad) read-modify-write.
            @pl.when(j == 0)
            def _():
                psum_ref[rows, :] = jnp.zeros((tm, f_pad), jnp.float32)

            psum_blk = psum_ref[rows, :]
            count = psum_blk[:, f_pad - 1:f_pad]            # (tm, 1)
            not_found = count > jf - 0.5                    # count == j
            diff = cur - nfi_ref[...]
            dist2 = jnp.sum(diff * diff, axis=-1, keepdims=True)
            newly = jnp.logical_and(dist2 < eps_sq, not_found)
            accum = jnp.logical_and(not_found, jnp.logical_not(newly))
            psum_new = psum_blk + jnp.where(accum, cur + cnt_onehot, 0.0)
            psum_ref[rows, :] = psum_new

            # ---- last useful hop: smoothed combine + MLP + log_softmax ----
            @pl.when(j == last)
            def _():
                feat0 = feat_ref[...]
                hops = psum_new[:, f_pad - 1:f_pad]
                denom = jnp.maximum(hops, 1.0)
                comb = (1.0 - alpha_f) * psum_new / denom + alpha_f * feat0
                x = jnp.where(hops < 0.5, feat0, comb)      # hop==0 nodes keep feat

                h1 = jnp.dot(x.astype(jnp.bfloat16), w1_ref[...],
                             preferred_element_type=jnp.float32) + b1_ref[...]
                h1 = jnp.maximum(h1, 0.0)
                h2 = jnp.dot(h1.astype(jnp.bfloat16), w2_ref[...],
                             preferred_element_type=jnp.float32) + b2_ref[...]
                h2 = jnp.maximum(h2, 0.0)
                logits = jnp.dot(h2.astype(jnp.bfloat16), w3_ref[...],
                                 preferred_element_type=jnp.float32) + b3_ref[...]
                z = logits - jnp.max(logits, axis=-1, keepdims=True)
                lse = jnp.log(jnp.sum(jnp.exp(z), axis=-1, keepdims=True))
                out_ref[...] = z - lse

        # Hop 0: current iterate is the (L1-normalized) input feature; the
        # adjacency is never touched (its block index is frozen, see specs).
        @pl.when(j == 0)
        def _():
            process(feat_ref[...])

        # Hops >= 1: (A+I)_rows @ prev (bf16 ping-pong, no re-cast), then the
        # exact f32 1/self_loop_degree row scale.
        @pl.when(j > 0)
        def _():
            roff = pl.multiple_of(((j - 1) % 2) * n_pad, 16)
            prev = prop_ref[pl.ds(roff, n_pad), :]          # bf16, read as-is
            acc = jnp.dot(adj_ref[...].astype(jnp.bfloat16), prev,
                          preferred_element_type=jnp.float32)
            process(inv_ref[...] * acc)

    # ---- BlockSpecs: block indices are frozen on hops that do not need the
    # operand, so no DMA is issued for them (Pallas skips the copy when the
    # index is unchanged between consecutive steps). ----
    def adj_index(j, m):
        return (jnp.where(j < 1, 0, m), 0)          # unused at hop 0

    def inv_index(j, m):
        return (jnp.where(j < 1, 0, m), 0)          # unused at hop 0

    def feat_index(j, m):
        use = jnp.logical_or(j < 1, j == last)      # used at hop 0 and the epilogue
        return (jnp.where(use, m, m_tiles - 1), 0)

    def out_index(j, m):
        return (jnp.where(j == last, m, 0), 0)      # single, valid writeback per tile

    def const2(shape):
        return pl.BlockSpec(shape, lambda j, m: (0, 0))

    return pl.pallas_call(
        kernel,
        out_shape=jax.ShapeDtypeStruct((n_pad, c_pad), jnp.float32),
        grid=(n_hops, m_tiles),
        in_specs=[
            pl.BlockSpec((tm, n_pad), adj_index),        # A+I rows (bf16 or int8)
            pl.BlockSpec((tm, 1), inv_index),            # exact f32 1/deg row scale
            pl.BlockSpec((tm, f_pad), feat_index),       # L1-normalized features
            const2((1, f_pad)),                          # norm_fea_inf
            const2((f_pad, h_pad)), const2((1, h_pad)),  # W1, b1
            const2((h_pad, h_pad)), const2((1, h_pad)),  # W2, b2
            const2((h_pad, c_pad)), const2((1, c_pad)),  # W3, b3 (f32, -1e30 pad)
        ],
        out_specs=pl.BlockSpec((tm, c_pad), out_index),
        scratch_shapes=[
            pltpu.VMEM((2 * n_pad, f_pad), jnp.bfloat16),  # ping-pong propagated feats
            pltpu.VMEM((n_pad, f_pad), jnp.float32),       # psum (+ hop count, last lane)
        ],
        compiler_params=pltpu.CompilerParams(
            # Both axes are strictly sequential: every hop consumes all row
            # tiles of the previous hop from the shared VMEM ping-pong buffer.
            dimension_semantics=("arbitrary", "arbitrary"),
            vmem_limit_bytes=vmem_limit_bytes,
        ),
    )(adj_p, inv_p, feat_p, nfi_p, w1, b1, w2, b2, w3, b3)


# ---------------------------------------------------------------------------
# Full forward: tiny wrapper-side graph preprocessing + fused Pallas hot path.
# ---------------------------------------------------------------------------
def ndls_forward(A, h, params, *, k1, eps1, alpha, tm=256, adj_dtype=None):
    """tm: 256 is a good default (keep <=256 on v7x, 512 worth trying on v5e)."""
    W1, b1, W2, b2, W3, b3 = params
    N = A.shape[0]
    f_in = h.shape[1]
    hidden = W1.shape[1]
    n_classes = W3.shape[1]

    # ---- graph preprocessing (matches ndls_f) -----------------------------
    deg = jnp.sum(A, axis=1)
    self_loop_degree = deg + 1.0
    edge_sum = jnp.sum(A != 0).astype(jnp.float32)        # directed-edge count
    norm_a_inf = (self_loop_degree / (2.0 * edge_sum + N))[None, :]
    inv_deg = (1.0 / self_loop_degree)[:, None]           # exact f32, applied in-kernel
    adj_plus_i = A + jnp.eye(N, dtype=A.dtype)            # unnormalized (0/1 for simple graphs)

    # F.normalize(h, p=1, dim=1)
    feat = h / jnp.maximum(jnp.sum(jnp.abs(h), axis=1, keepdims=True), 1e-12)
    nfi = norm_a_inf @ feat                                # norm_fea_inf (hoisted matvec)

    # ---- lane / sublane padding -------------------------------------------
    assert tm % 32 == 0, "tm must be a multiple of 32"
    n_pad = _round_up(N, tm)
    f_pad = _round_up(f_in + 1, LANE)      # >= f_in + 1: last lane carries hop count
    h_pad = _round_up(hidden, LANE)
    c_pad = _round_up(n_classes, LANE)

    if adj_dtype is None:
        # v6e is adjacency-bandwidth bound: stream exactly-representable 0/1
        # A+I as int8 (half the bytes, cast to bf16 in-kernel).  v5e is MXU
        # bound and v7x sits near the crossover -> keep bf16 there.
        try:
            kind = jax.devices()[0].device_kind.lower()
        except Exception:
            kind = ""
        adj_dtype = jnp.bfloat16
        if "v6" in kind and n_pad % LANE == 0:
            if bool(jnp.all(jnp.logical_or(adj_plus_i == 0, adj_plus_i == 1))):
                adj_dtype = jnp.int8

    adj_p = _pad2d(adj_plus_i, n_pad, n_pad).astype(adj_dtype)
    inv_p = _pad2d(inv_deg, n_pad, 1)
    feat_p = _pad2d(feat, n_pad, f_pad)
    nfi_p = _pad2d(nfi, 1, f_pad)

    w1p = _pad2d(W1, f_pad, h_pad).astype(jnp.bfloat16)
    w2p = _pad2d(W2, h_pad, h_pad).astype(jnp.bfloat16)
    w3p = _pad2d(W3, h_pad, c_pad).astype(jnp.bfloat16)
    b1p = _pad2d(b1, 1, h_pad)
    b2p = _pad2d(b2, 1, h_pad)
    # Padded class logits get a huge negative bias (kept in f32 on purpose).
    b3p = _pad2d(b3, 1, c_pad, fill=-1e30)

    vmem_limit = _pick_vmem_limit(n_pad, f_pad, h_pad, c_pad, tm,
                                  jnp.dtype(adj_dtype).itemsize)

    out_p = ndls_fused(adj_p, inv_p, feat_p, nfi_p,
                       w1p, b1p, w2p, b2p, w3p, b3p,
                       k1=max(int(k1), 2), eps1=eps1, alpha=alpha, tm=tm,
                       vmem_limit_bytes=vmem_limit)
    return out_p[:N, :n_classes]


def init_linear(key, fan_in, fan_out):
    # Deterministic PyTorch-style uniform init, weight stored as (in, out).
    kw, kb = jax.random.split(key)
    bound = 1.0 / math.sqrt(fan_in)
    W = jax.random.uniform(kw, (fan_in, fan_out), jnp.float32, -bound, bound)
    b = jax.random.uniform(kb, (1, fan_out), jnp.float32, -bound, bound)
    return W, b


if __name__ == "__main__":
    # net_params (small, deterministic)
    N, IN_DIM, HIDDEN, N_CLASSES = 64, 32, 32, 8
    K1, EPS1, ALPHA = 4, 0.05, 0.15   # k2 / epsilon2 are unused by forward()

    key = jax.random.PRNGKey(0)
    k_adj, k_feat, kl1, kl2, kl3 = jax.random.split(key, 5)

    # Synthetic undirected graph: symmetric 0/1 dense adjacency, no self loops.
    A = (jax.random.uniform(k_adj, (N, N)) < 0.08).astype(jnp.float32)
    A = jnp.maximum(A, A.T) * (1.0 - jnp.eye(N, dtype=jnp.float32))

    # Node features.
    h = jax.random.normal(k_feat, (N, IN_DIM), dtype=jnp.float32)

    # L=2 -> Linear(in,hid), Linear(hid,hid), Linear(hid,classes)
    W1, b1 = init_linear(kl1, IN_DIM, HIDDEN)
    W2, b2 = init_linear(kl2, HIDDEN, HIDDEN)
    W3, b3 = init_linear(kl3, HIDDEN, N_CLASSES)

    # tm=32 exercises the multi-row-tile path (2 tiles) at this toy size.
    out = ndls_forward(A, h, (W1, b1, W2, b2, W3, b3),
                       k1=K1, eps1=EPS1, alpha=ALPHA, tm=32)
    jax.block_until_ready(out)

    assert out.shape == (N, N_CLASSES)
    assert bool(jnp.all(jnp.isfinite(out)))
    print("KERNEL_OK")
</pallas_src>

<mosaic_0001>
module attributes {stable_mosaic.version = 11 : i64} {
  func.func @kernel(%arg0: i32, %arg1: i32, %arg2: memref<32x64xbf16, #tpu.memory_space<vmem>>, %arg3: memref<32x1xf32, #tpu.memory_space<vmem>>, %arg4: memref<32x128xf32, #tpu.memory_space<vmem>>, %arg5: memref<1x128xf32, #tpu.memory_space<vmem>>, %arg6: memref<128x128xbf16, #tpu.memory_space<vmem>>, %arg7: memref<1x128xf32, #tpu.memory_space<vmem>>, %arg8: memref<128x128xbf16, #tpu.memory_space<vmem>>, %arg9: memref<1x128xf32, #tpu.memory_space<vmem>>, %arg10: memref<128x128xbf16, #tpu.memory_space<vmem>>, %arg11: memref<1x128xf32, #tpu.memory_space<vmem>>, %arg12: memref<32x128xf32, #tpu.memory_space<vmem>>, %arg13: memref<128x128xbf16, #tpu.memory_space<vmem>>, %arg14: memref<64x128xf32, #tpu.memory_space<vmem>>) attributes {dimension_semantics = [#tpu.dimension_semantics<arbitrary>, #tpu.dimension_semantics<arbitrary>], iteration_bounds = array<i64: 3, 2>, scalar_prefetch = 0 : i64, scratch_operands = 2 : i64, tpu.core_type = #tpu.core_type<tc>, window_params = [{transform_indices = @transform_0, window_bounds = array<i64: 32, 64>}, {transform_indices = @transform_1, window_bounds = array<i64: 32, 1>}, {transform_indices = @transform_2, window_bounds = array<i64: 32, 128>}, {pipeline_mode = #tpu.pipeline_mode<synchronous>, transform_indices = @transform_3, window_bounds = array<i64: 1, 128>}, {pipeline_mode = #tpu.pipeline_mode<synchronous>, transform_indices = @transform_4, window_bounds = array<i64: 128, 128>}, {pipeline_mode = #tpu.pipeline_mode<synchronous>, transform_indices = @transform_5, window_bounds = array<i64: 1, 128>}, {pipeline_mode = #tpu.pipeline_mode<synchronous>, transform_indices = @transform_6, window_bounds = array<i64: 128, 128>}, {pipeline_mode = #tpu.pipeline_mode<synchronous>, transform_indices = @transform_7, window_bounds = array<i64: 1, 128>}, {pipeline_mode = #tpu.pipeline_mode<synchronous>, transform_indices = @transform_8, window_bounds = array<i64: 128, 128>}, {pipeline_mode = #tpu.pipeline_mode<synchronous>, transform_indices = @transform_9, window_bounds = array<i64: 1, 128>}, {transform_indices = @transform_10, window_bounds = array<i64: 32, 128>}]} {
    %c32_i32 = arith.constant 32 : i32
    %0 = arith.muli %arg1, %c32_i32 : i32
    %1 = tpu.assume_multiple %0, 8 : i32
    %2 = arith.sitofp %arg0 : i32 to f32
    %3 = tpu.iota {dimensions = array<i32: 1>} : vector<32x128xi32>
    %c127_i32 = arith.constant 127 : i32
    %4 = vector.broadcast %c127_i32 : i32 to vector<32x128xi32>
    %5 = arith.cmpi eq, %3, %4 : vector<32x128xi32>
    %6 = arith.extui %5 : vector<32x128xi1> to vector<32x128xi32>
    %7 = arith.sitofp %6 : vector<32x128xi32> to vector<32x128xf32>
    %c0_i32 = arith.constant 0 : i32
    %8 = arith.cmpi eq, %arg0, %c0_i32 : i32
    %9 = arith.extui %8 : i1 to i32
    %c0_i32_0 = arith.constant 0 : i32
    %10 = arith.cmpi ne, %9, %c0_i32_0 : i32
    scf.if %10 {
      %c0 = arith.constant 0 : index
      %c0_3 = arith.constant 0 : index
      %14 = vector.load %arg4[%c0, %c0_3] : memref<32x128xf32, #tpu.memory_space<vmem>>, vector<32x128xf32>
      %c2_i32 = arith.constant 2 : i32
      %15 = arith.cmpi slt, %arg0, %c2_i32 : i32
      %16 = arith.extui %15 : i1 to i32
      %c0_i32_4 = arith.constant 0 : i32
      %17 = arith.cmpi ne, %16, %c0_i32_4 : i32
      scf.if %17 {
        %c2_i32_17 = arith.constant 2 : i32
        %c0_i32_18 = arith.constant 0 : i32
        %49 = arith.cmpi eq, %c2_i32_17, %c0_i32_18 : i32
        %c1_i32 = arith.constant 1 : i32
        %50 = arith.select %49, %c1_i32, %c2_i32_17 : i32
        %51 = arith.remsi %arg0, %50 : i32
        %c0_i32_19 = arith.constant 0 : i32
        %52 = arith.cmpi ne, %51, %c0_i32_19 : i32
        %c0_i32_20 = arith.constant 0 : i32
        %53 = arith.cmpi slt, %51, %c0_i32_20 : i32
        %c0_i32_21 = arith.constant 0 : i32
        %54 = arith.cmpi slt, %50, %c0_i32_21 : i32
        %55 = arith.xori %53, %54 : i1
        %56 = arith.andi %55, %52 : i1
        %57 = arith.addi %51, %50 : i32
        %58 = arith.select %56, %57, %51 : i32
        %c64_i32 = arith.constant 64 : i32
        %59 = arith.muli %58, %c64_i32 : i32
        %60 = arith.addi %59, %0 : i32
        %61 = tpu.assume_multiple %60, 16 : i32
        %62 = arith.truncf %14 : vector<32x128xf32> to vector<32x128xbf16>
        %63 = arith.index_cast %61 : i32 to index
        %c0_22 = arith.constant 0 : index
        %64 = vector.load %arg13[%63, %c0_22] : memref<128x128xbf16, #tpu.memory_space<vmem>>, vector<32x128xbf16>
        tpu.vector_store %arg13[%63, %c0_22], %62 {strides = array<i32>} : memref<128x128xbf16, #tpu.memory_space<vmem>>, vector<32x128xbf16>,
      } else {
      }
      %c0_i32_5 = arith.constant 0 : i32
      %18 = arith.cmpi eq, %arg0, %c0_i32_5 : i32
      %19 = arith.extui %18 : i1 to i32
      %c0_i32_6 = arith.constant 0 : i32
      %20 = arith.cmpi ne, %19, %c0_i32_6 : i32
      scf.if %20 {
        %cst_17 = arith.constant 0.000000e+00 : f32
        %49 = vector.broadcast %cst_17 : f32 to vector<32x128xf32>
        %50 = arith.index_cast %1 : i32 to index
        %c0_18 = arith.constant 0 : index
        %51 = vector.load %arg14[%50, %c0_18] : memref<64x128xf32, #tpu.memory_space<vmem>>, vector<32x128xf32>
        tpu.vector_store %arg14[%50, %c0_18], %49 {strides = array<i32>} : memref<64x128xf32, #tpu.memory_space<vmem>>, vector<32x128xf32>,
      } else {
      }
      %21 = arith.index_cast %1 : i32 to index
      %c0_7 = arith.constant 0 : index
      %22 = vector.load %arg14[%21, %c0_7] : memref<64x128xf32, #tpu.memory_space<vmem>>, vector<32x128xf32>
      %23 = vector.extract_strided_slice %22 {offsets = [0, 127], sizes = [32, 1], strides = [1, 1]} : vector<32x128xf32> to vector<32x1xf32>
      %cst = arith.constant 5.000000e-01 : f32
      %24 = arith.subf %2, %cst : f32
      %25 = vector.broadcast %24 : f32 to vector<32x1xf32>
      %26 = arith.cmpf ogt, %23, %25 : vector<32x1xf32>
      %c0_8 = arith.constant 0 : index
      %c0_9 = arith.constant 0 : index
      %27 = vector.load %arg5[%c0_8, %c0_9] : memref<1x128xf32, #tpu.memory_space<vmem>>, vector<1x128xf32>
      %28 = vector.broadcast %27 : vector<1x128xf32> to vector<32x128xf32>
      %29 = arith.subf %14, %28 : vector<32x128xf32>
      %30 = arith.mulf %29, %29 : vector<32x128xf32>
      %cst_10 = arith.constant dense<0.000000e+00> : vector<32xf32>
      %31 = vector.multi_reduction <add>, %30, %cst_10 [1] : vector<32x128xf32> to vector<32xf32>
      %32 = vector.shape_cast %31 : vector<32xf32> to vector<32x1xf32>
      %cst_11 = arith.constant 2.500000e-03 : f32
      %33 = vector.broadcast %cst_11 : f32 to vector<32x1xf32>
      %34 = arith.cmpf olt, %32, %33 : vector<32x1xf32>
      %35 = arith.andi %34, %26 : vector<32x1xi1>
      %cst_12 = arith.constant dense<true> : vector<32x1xi1>
      %36 = arith.xori %35, %cst_12 : vector<32x1xi1>
      %37 = arith.andi %26, %36 : vector<32x1xi1>
      %38 = arith.addf %14, %7 : vector<32x128xf32>
      %cst_13 = arith.constant 0.000000e+00 : f32
      %39 = vector.shape_cast %37 : vector<32x1xi1> to vector<32x1xi1>
      %40 = vector.broadcast %39 : vector<32x1xi1> to vector<32x128xi1>
      %41 = vector.broadcast %cst_13 : f32 to vector<32x128xf32>
      %42 = arith.select %40, %38, %41 : vector<32x128xi1>, vector<32x128xf32>
      %43 = arith.addf %22, %42 : vector<32x128xf32>
      %44 = arith.index_cast %1 : i32 to index
      %c0_14 = arith.constant 0 : index
      %45 = vector.load %arg14[%44, %c0_14] : memref<64x128xf32, #tpu.memory_space<vmem>>, vector<32x128xf32>
      tpu.vector_store %arg14[%44, %c0_14], %43 {strides = array<i32>} : memref<64x128xf32, #tpu.memory_space<vmem>>, vector<32x128xf32>,
      %c2_i32_15 = arith.constant 2 : i32
      %46 = arith.cmpi eq, %arg0, %c2_i32_15 : i32
      %47 = arith.extui %46 : i1 to i32
      %c0_i32_16 = arith.constant 0 : i32
      %48 = arith.cmpi ne, %47, %c0_i32_16 : i32
      scf.if %48 {
        %c0_17 = arith.constant 0 : index
        %c0_18 = arith.constant 0 : index
        %49 = vector.load %arg4[%c0_17, %c0_18] : memref<32x128xf32, #tpu.memory_space<vmem>>, vector<32x128xf32>
        %50 = vector.extract_strided_slice %43 {offsets = [0, 127], sizes = [32, 1], strides = [1, 1]} : vector<32x128xf32> to vector<32x1xf32>
        %cst_19 = arith.constant 1.000000e+00 : f32
        %51 = vector.broadcast %cst_19 : f32 to vector<32x1xf32>
        %52 = arith.maximumf %50, %51 : vector<32x1xf32>
        %cst_20 = arith.constant 8.500000e-01 : f32
        %53 = vector.broadcast %cst_20 : f32 to vector<32x128xf32>
        %54 = arith.mulf %53, %43 : vector<32x128xf32>
        %55 = vector.broadcast %52 : vector<32x1xf32> to vector<32x128xf32>
        %56 = arith.divf %54, %55 : vector<32x128xf32>
        %cst_21 = arith.constant 1.500000e-01 : f32
        %57 = vector.broadcast %cst_21 : f32 to vector<32x128xf32>
        %58 = arith.mulf %57, %49 : vector<32x128xf32>
        %59 = arith.addf %56, %58 : vector<32x128xf32>
        %cst_22 = arith.constant 5.000000e-01 : f32
        %60 = vector.broadcast %cst_22 : f32 to vector<32x1xf32>
        %61 = arith.cmpf olt, %50, %60 : vector<32x1xf32>
        %62 = vector.shape_cast %61 : vector<32x1xi1> to vector<32x1xi1>
        %63 = vector.broadcast %62 : vector<32x1xi1> to vector<32x128xi1>
        %64 = arith.select %63, %49, %59 : vector<32x128xi1>, vector<32x128xf32>
        %65 = arith.truncf %64 : vector<32x128xf32> to vector<32x128xbf16>
        %c0_23 = arith.constant 0 : index
        %c0_24 = arith.constant 0 : index
        %66 = vector.load %arg6[%c0_23, %c0_24] : memref<128x128xbf16, #tpu.memory_space<vmem>>, vector<128x128xbf16>
        %cst_25 = arith.constant dense<0.000000e+00> : vector<32x128xf32>
        %67 = tpu.matmul %65, %66, %cst_25 {dimension_numbers = #tpu.dot_dimension_numbers<[1], [0], [0], [1], [0, 0, 1, 1], [], []>} : vector<32x128xbf16>, vector<128x128xbf16>, vector<32x128xf32> -> vector<32x128xf32>
        %c0_26 = arith.constant 0 : index
        %c0_27 = arith.constant 0 : index
        %68 = vector.load %arg7[%c0_26, %c0_27] : memref<1x128xf32, #tpu.memory_space<vmem>>, vector<1x128xf32>
        %69 = vector.broadcast %68 : vector<1x128xf32> to vector<32x128xf32>
        %70 = arith.addf %67, %69 : vector<32x128xf32>
        %cst_28 = arith.constant 0.000000e+00 : f32
        %71 = vector.broadcast %cst_28 : f32 to vector<32x128xf32>
        %72 = arith.maximumf %70, %71 : vector<32x128xf32>
        %73 = arith.truncf %72 : vector<32x128xf32> to vector<32x128xbf16>
        %c0_29 = arith.constant 0 : index
        %c0_30 = arith.constant 0 : index
        %74 = vector.load %arg8[%c0_29, %c0_30] : memref<128x128xbf16, #tpu.memory_space<vmem>>, vector<128x128xbf16>
        %cst_31 = arith.constant dense<0.000000e+00> : vector<32x128xf32>
        %75 = tpu.matmul %73, %74, %cst_31 {dimension_numbers = #tpu.dot_dimension_numbers<[1], [0], [0], [1], [0, 0, 1, 1], [], []>} : vector<32x128xbf16>, vector<128x128xbf16>, vector<32x128xf32> -> vector<32x128xf32>
        %c0_32 = arith.constant 0 : index
        %c0_33 = arith.constant 0 : index
        %76 = vector.load %arg9[%c0_32, %c0_33] : memref<1x128xf32, #tpu.memory_space<vmem>>, vector<1x128xf32>
        %77 = vector.broadcast %76 : vector<1x128xf32> to vector<32x128xf32>
        %78 = arith.addf %75, %77 : vector<32x128xf32>
        %cst_34 = arith.constant 0.000000e+00 : f32
        %79 = vector.broadcast %cst_34 : f32 to vector<32x128xf32>
        %80 = arith.maximumf %78, %79 : vector<32x128xf32>
        %81 = arith.truncf %80 : vector<32x128xf32> to vector<32x128xbf16>
        %c0_35 = arith.constant 0 : index
        %c0_36 = arith.constant 0 : index
        %82 = vector.load %arg10[%c0_35, %c0_36] : memref<128x128xbf16, #tpu.memory_space<vmem>>, vector<128x128xbf16>
        %cst_37 = arith.constant dense<0.000000e+00> : vector<32x128xf32>
        %83 = tpu.matmul %81, %82, %cst_37 {dimension_numbers = #tpu.dot_dimension_numbers<[1], [0], [0], [1], [0, 0, 1, 1], [], []>} : vector<32x128xbf16>, vector<128x128xbf16>, vector<32x128xf32> -> vector<32x128xf32>
        %c0_38 = arith.constant 0 : index
        %c0_39 = arith.constant 0 : index
        %84 = vector.load %arg11[%c0_38, %c0_39] : memref<1x128xf32, #tpu.memory_space<vmem>>, vector<1x128xf32>
        %85 = vector.broadcast %84 : vector<1x128xf32> to vector<32x128xf32>
        %86 = arith.addf %83, %85 : vector<32x128xf32>
        %cst_40 = arith.constant dense<0xFF800000> : vector<32xf32>
        %87 = vector.multi_reduction <maximumf>, %86, %cst_40 [1] : vector<32x128xf32> to vector<32xf32>
        %88 = vector.shape_cast %87 : vector<32xf32> to vector<32x1xf32>
        %89 = vector.broadcast %88 : vector<32x1xf32> to vector<32x128xf32>
        %90 = arith.subf %86, %89 : vector<32x128xf32>
        %91 = math.exp %90 : vector<32x128xf32>
        %cst_41 = arith.constant dense<0.000000e+00> : vector<32xf32>
        %92 = vector.multi_reduction <add>, %91, %cst_41 [1] : vector<32x128xf32> to vector<32xf32>
        %93 = vector.shape_cast %92 : vector<32xf32> to vector<32x1xf32>
        %94 = math.log %93 : vector<32x1xf32>
        %95 = vector.broadcast %94 : vector<32x1xf32> to vector<32x128xf32>
        %96 = arith.subf %90, %95 : vector<32x128xf32>
        %c0_42 = arith.constant 0 : index
        %c0_43 = arith.constant 0 : index
        %97 = vector.load %arg12[%c0_42, %c0_43] : memref<32x128xf32, #tpu.memory_space<vmem>>, vector<32x128xf32>
        tpu.vector_store %arg12[%c0_42, %c0_43], %96 {strides = array<i32>} : memref<32x128xf32, #tpu.memory_space<vmem>>, vector<32x128xf32>,
      } else {
      }
    } else {
    }
    %c0_i32_1 = arith.constant 0 : i32
    %11 = arith.cmpi sgt, %arg0, %c0_i32_1 : i32
    %12 = arith.extui %11 : i1 to i32
    %c0_i32_2 = arith.constant 0 : i32
    %13 = arith.cmpi ne, %12, %c0_i32_2 : i32
    scf.if %13 {
      %c1_i32 = arith.constant 1 : i32
      %14 = arith.subi %arg0, %c1_i32 : i32
      %c2_i32 = arith.constant 2 : i32
      %c0_i32_3 = arith.constant 0 : i32
      %15 = arith.cmpi eq, %c2_i32, %c0_i32_3 : i32
      %c1_i32_4 = arith.constant 1 : i32
      %16 = arith.select %15, %c1_i32_4, %c2_i32 : i32
      %17 = arith.remsi %14, %16 : i32
      %c0_i32_5 = arith.constant 0 : i32
      %18 = arith.cmpi ne, %17, %c0_i32_5 : i32
      %c0_i32_6 = arith.constant 0 : i32
      %19 = arith.cmpi slt, %17, %c0_i32_6 : i32
      %c0_i32_7 = arith.constant 0 : i32
      %20 = arith.cmpi slt, %16, %c0_i32_7 : i32
      %21 = arith.xori %19, %20 : i1
      %22 = arith.andi %21, %18 : i1
      %23 = arith.addi %17, %16 : i32
      %24 = arith.select %22, %23, %17 : i32
      %c64_i32 = arith.constant 64 : i32
      %25 = arith.muli %24, %c64_i32 : i32
      %26 = tpu.assume_multiple %25, 16 : i32
      %27 = arith.index_cast %26 : i32 to index
      %c0 = arith.constant 0 : index
      %28 = vector.load %arg13[%27, %c0] : memref<128x128xbf16, #tpu.memory_space<vmem>>, vector<64x128xbf16>
      %c0_8 = arith.constant 0 : index
      %c0_9 = arith.constant 0 : index
      %29 = vector.load %arg2[%c0_8, %c0_9] : memref<32x64xbf16, #tpu.memory_space<vmem>>, vector<32x64xbf16>
      %cst = arith.constant dense<0.000000e+00> : vector<32x128xf32>
      %30 = tpu.matmul %29, %28, %cst {dimension_numbers = #tpu.dot_dimension_numbers<[1], [0], [0], [1], [0, 0, 1, 1], [], []>} : vector<32x64xbf16>, vector<64x128xbf16>, vector<32x128xf32> -> vector<32x128xf32>
      %c0_10 = arith.constant 0 : index
      %c0_11 = arith.constant 0 : index
      %31 = vector.load %arg3[%c0_10, %c0_11] : memref<32x1xf32, #tpu.memory_space<vmem>>, vector<32x1xf32>
      %32 = vector.broadcast %31 : vector<32x1xf32> to vector<32x128xf32>
      %33 = arith.mulf %32, %30 : vector<32x128xf32>
      %c2_i32_12 = arith.constant 2 : i32
      %34 = arith.cmpi slt, %arg0, %c2_i32_12 : i32
      %35 = arith.extui %34 : i1 to i32
      %c0_i32_13 = arith.constant 0 : i32
      %36 = arith.cmpi ne, %35, %c0_i32_13 : i32
      scf.if %36 {
        %c2_i32_27 = arith.constant 2 : i32
        %c0_i32_28 = arith.constant 0 : i32
        %68 = arith.cmpi eq, %c2_i32_27, %c0_i32_28 : i32
        %c1_i32_29 = arith.constant 1 : i32
        %69 = arith.select %68, %c1_i32_29, %c2_i32_27 : i32
        %70 = arith.remsi %arg0, %69 : i32
        %c0_i32_30 = arith.constant 0 : i32
        %71 = arith.cmpi ne, %70, %c0_i32_30 : i32
        %c0_i32_31 = arith.constant 0 : i32
        %72 = arith.cmpi slt, %70, %c0_i32_31 : i32
        %c0_i32_32 = arith.constant 0 : i32
        %73 = arith.cmpi slt, %69, %c0_i32_32 : i32
        %74 = arith.xori %72, %73 : i1
        %75 = arith.andi %74, %71 : i1
        %76 = arith.addi %70, %69 : i32
        %77 = arith.select %75, %76, %70 : i32
        %c64_i32_33 = arith.constant 64 : i32
        %78 = arith.muli %77, %c64_i32_33 : i32
        %79 = arith.addi %78, %0 : i32
        %80 = tpu.assume_multiple %79, 16 : i32
        %81 = arith.truncf %33 : vector<32x128xf32> to vector<32x128xbf16>
        %82 = arith.index_cast %80 : i32 to index
        %c0_34 = arith.constant 0 : index
        %83 = vector.load %arg13[%82, %c0_34] : memref<128x128xbf16, #tpu.memory_space<vmem>>, vector<32x128xbf16>
        tpu.vector_store %arg13[%82, %c0_34], %81 {strides = array<i32>} : memref<128x128xbf16, #tpu.memory_space<vmem>>, vector<32x128xbf16>,
      } else {
      }
      %c0_i32_14 = arith.constant 0 : i32
      %37 = arith.cmpi eq, %arg0, %c0_i32_14 : i32
      %38 = arith.extui %37 : i1 to i32
      %c0_i32_15 = arith.constant 0 : i32
      %39 = arith.cmpi ne, %38, %c0_i32_15 : i32
      scf.if %39 {
        %cst_27 = arith.constant 0.000000e+00 : f32
        %68 = vector.broadcast %cst_27 : f32 to vector<32x128xf32>
        %69 = arith.index_cast %1 : i32 to index
        %c0_28 = arith.constant 0 : index
        %70 = vector.load %arg14[%69, %c0_28] : memref<64x128xf32, #tpu.memory_space<vmem>>, vector<32x128xf32>
        tpu.vector_store %arg14[%69, %c0_28], %68 {strides = array<i32>} : memref<64x128xf32, #tpu.memory_space<vmem>>, vector<32x128xf32>,
      } else {
      }
      %40 = arith.index_cast %1 : i32 to index
      %c0_16 = arith.constant 0 : index
      %41 = vector.load %arg14[%40, %c0_16] : memref<64x128xf32, #tpu.memory_space<vmem>>, vector<32x128xf32>
      %42 = vector.extract_strided_slice %41 {offsets = [0, 127], sizes = [32, 1], strides = [1, 1]} : vector<32x128xf32> to vector<32x1xf32>
      %cst_17 = arith.constant 5.000000e-01 : f32
      %43 = arith.subf %2, %cst_17 : f32
      %44 = vector.broadcast %43 : f32 to vector<32x1xf32>
      %45 = arith.cmpf ogt, %42, %44 : vector<32x1xf32>
      %c0_18 = arith.constant 0 : index
      %c0_19 = arith.constant 0 : index
      %46 = vector.load %arg5[%c0_18, %c0_19] : memref<1x128xf32, #tpu.memory_space<vmem>>, vector<1x128xf32>
      %47 = vector.broadcast %46 : vector<1x128xf32> to vector<32x128xf32>
      %48 = arith.subf %33, %47 : vector<32x128xf32>
      %49 = arith.mulf %48, %48 : vector<32x128xf32>
      %cst_20 = arith.constant dense<0.000000e+00> : vector<32xf32>
      %50 = vector.multi_reduction <add>, %49, %cst_20 [1] : vector<32x128xf32> to vector<32xf32>
      %51 = vector.shape_cast %50 : vector<32xf32> to vector<32x1xf32>
      %cst_21 = arith.constant 2.500000e-03 : f32
      %52 = vector.broadcast %cst_21 : f32 to vector<32x1xf32>
      %53 = arith.cmpf olt, %51, %52 : vector<32x1xf32>
      %54 = arith.andi %53, %45 : vector<32x1xi1>
      %cst_22 = arith.constant dense<true> : vector<32x1xi1>
      %55 = arith.xori %54, %cst_22 : vector<32x1xi1>
      %56 = arith.andi %45, %55 : vector<32x1xi1>
      %57 = arith.addf %33, %7 : vector<32x128xf32>
      %cst_23 = arith.constant 0.000000e+00 : f32
      %58 = vector.shape_cast %56 : vector<32x1xi1> to vector<32x1xi1>
      %59 = vector.broadcast %58 : vector<32x1xi1> to vector<32x128xi1>
      %60 = vector.broadcast %cst_23 : f32 to vector<32x128xf32>
      %61 = arith.select %59, %57, %60 : vector<32x128xi1>, vector<32x128xf32>
      %62 = arith.addf %41, %61 : vector<32x128xf32>
      %63 = arith.index_cast %1 : i32 to index
      %c0_24 = arith.constant 0 : index
      %64 = vector.load %arg14[%63, %c0_24] : memref<64x128xf32, #tpu.memory_space<vmem>>, vector<32x128xf32>
      tpu.vector_store %arg14[%63, %c0_24], %62 {strides = array<i32>} : memref<64x128xf32, #tpu.memory_space<vmem>>, vector<32x128xf32>,
      %c2_i32_25 = arith.constant 2 : i32
      %65 = arith.cmpi eq, %arg0, %c2_i32_25 : i32
      %66 = arith.extui %65 : i1 to i32
      %c0_i32_26 = arith.constant 0 : i32
      %67 = arith.cmpi ne, %66, %c0_i32_26 : i32
      scf.if %67 {
        %c0_27 = arith.constant 0 : index
        %c0_28 = arith.constant 0 : index
        %68 = vector.load %arg4[%c0_27, %c0_28] : memref<32x128xf32, #tpu.memory_space<vmem>>, vector<32x128xf32>
        %69 = vector.extract_strided_slice %62 {offsets = [0, 127], sizes = [32, 1], strides = [1, 1]} : vector<32x128xf32> to vector<32x1xf32>
        %cst_29 = arith.constant 1.000000e+00 : f32
        %70 = vector.broadcast %cst_29 : f32 to vector<32x1xf32>
        %71 = arith.maximumf %69, %70 : vector<32x1xf32>
        %cst_30 = arith.constant 8.500000e-01 : f32
        %72 = vector.broadcast %cst_30 : f32 to vector<32x128xf32>
        %73 = arith.mulf %72, %62 : vector<32x128xf32>
        %74 = vector.broadcast %71 : vector<32x1xf32> to vector<32x128xf32>
        %75 = arith.divf %73, %74 : vector<32x128xf32>
        %cst_31 = arith.constant 1.500000e-01 : f32
        %76 = vector.broadcast %cst_31 : f32 to vector<32x128xf32>
        %77 = arith.mulf %76, %68 : vector<32x128xf32>
        %78 = arith.addf %75, %77 : vector<32x128xf32>
        %cst_32 = arith.constant 5.000000e-01 : f32
        %79 = vector.broadcast %cst_32 : f32 to vector<32x1xf32>
        %80 = arith.cmpf olt, %69, %79 : vector<32x1xf32>
        %81 = vector.shape_cast %80 : vector<32x1xi1> to vector<32x1xi1>
        %82 = vector.broadcast %81 : vector<32x1xi1> to vector<32x128xi1>
        %83 = arith.select %82, %68, %78 : vector<32x128xi1>, vector<32x128xf32>
        %84 = arith.truncf %83 : vector<32x128xf32> to vector<32x128xbf16>
        %c0_33 = arith.constant 0 : index
        %c0_34 = arith.constant 0 : index
        %85 = vector.load %arg6[%c0_33, %c0_34] : memref<128x128xbf16, #tpu.memory_space<vmem>>, vector<128x128xbf16>
        %cst_35 = arith.constant dense<0.000000e+00> : vector<32x128xf32>
        %86 = tpu.matmul %84, %85, %cst_35 {dimension_numbers = #tpu.dot_dimension_numbers<[1], [0], [0], [1], [0, 0, 1, 1], [], []>} : vector<32x128xbf16>, vector<128x128xbf16>, vector<32x128xf32> -> vector<32x128xf32>
        %c0_36 = arith.constant 0 : index
        %c0_37 = arith.constant 0 : index
        %87 = vector.load %arg7[%c0_36, %c0_37] : memref<1x128xf32, #tpu.memory_space<vmem>>, vector<1x128xf32>
        %88 = vector.broadcast %87 : vector<1x128xf32> to vector<32x128xf32>
        %89 = arith.addf %86, %88 : vector<32x128xf32>
        %cst_38 = arith.constant 0.000000e+00 : f32
        %90 = vector.broadcast %cst_38 : f32 to vector<32x128xf32>
        %91 = arith.maximumf %89, %90 : vector<32x128xf32>
        %92 = arith.truncf %91 : vector<32x128xf32> to vector<32x128xbf16>
        %c0_39 = arith.constant 0 : index
        %c0_40 = arith.constant 0 : index
        %93 = vector.load %arg8[%c0_39, %c0_40] : memref<128x128xbf16, #tpu.memory_space<vmem>>, vector<128x128xbf16>
        %cst_41 = arith.constant dense<0.000000e+00> : vector<32x128xf32>
        %94 = tpu.matmul %92, %93, %cst_41 {dimension_numbers = #tpu.dot_dimension_numbers<[1], [0], [0], [1], [0, 0, 1, 1], [], []>} : vector<32x128xbf16>, vector<128x128xbf16>, vector<32x128xf32> -> vector<32x128xf32>
        %c0_42 = arith.constant 0 : index
        %c0_43 = arith.constant 0 : index
        %95 = vector.load %arg9[%c0_42, %c0_43] : memref<1x128xf32, #tpu.memory_space<vmem>>, vector<1x128xf32>
        %96 = vector.broadcast %95 : vector<1x128xf32> to vector<32x128xf32>
        %97 = arith.addf %94, %96 : vector<32x128xf32>
        %cst_44 = arith.constant 0.000000e+00 : f32
        %98 = vector.broadcast %cst_44 : f32 to vector<32x128xf32>
        %99 = arith.maximumf %97, %98 : vector<32x128xf32>
        %100 = arith.truncf %99 : vector<32x128xf32> to vector<32x128xbf16>
        %c0_45 = arith.constant 0 : index
        %c0_46 = arith.constant 0 : index
        %101 = vector.load %arg10[%c0_45, %c0_46] : memref<128x128xbf16, #tpu.memory_space<vmem>>, vector<128x128xbf16>
        %cst_47 = arith.constant dense<0.000000e+00> : vector<32x128xf32>
        %102 = tpu.matmul %100, %101, %cst_47 {dimension_numbers = #tpu.dot_dimension_numbers<[1], [0], [0], [1], [0, 0, 1, 1], [], []>} : vector<32x128xbf16>, vector<128x128xbf16>, vector<32x128xf32> -> vector<32x128xf32>
        %c0_48 = arith.constant 0 : index
        %c0_49 = arith.constant 0 : index
        %103 = vector.load %arg11[%c0_48, %c0_49] : memref<1x128xf32, #tpu.memory_space<vmem>>, vector<1x128xf32>
        %104 = vector.broadcast %103 : vector<1x128xf32> to vector<32x128xf32>
        %105 = arith.addf %102, %104 : vector<32x128xf32>
        %cst_50 = arith.constant dense<0xFF800000> : vector<32xf32>
        %106 = vector.multi_reduction <maximumf>, %105, %cst_50 [1] : vector<32x128xf32> to vector<32xf32>
        %107 = vector.shape_cast %106 : vector<32xf32> to vector<32x1xf32>
        %108 = vector.broadcast %107 : vector<32x1xf32> to vector<32x128xf32>
        %109 = arith.subf %105, %108 : vector<32x128xf32>
        %110 = math.exp %109 : vector<32x128xf32>
        %cst_51 = arith.constant dense<0.000000e+00> : vector<32xf32>
        %111 = vector.multi_reduction <add>, %110, %cst_51 [1] : vector<32x128xf32> to vector<32xf32>
        %112 = vector.shape_cast %111 : vector<32xf32> to vector<32x1xf32>
        %113 = math.log %112 : vector<32x1xf32>
        %114 = vector.broadcast %113 : vector<32x1xf32> to vector<32x128xf32>
        %115 = arith.subf %109, %114 : vector<32x128xf32>
        %c0_52 = arith.constant 0 : index
        %c0_53 = arith.constant 0 : index
        %116 = vector.load %arg12[%c0_52, %c0_53] : memref<32x128xf32, #tpu.memory_space<vmem>>, vector<32x128xf32>
        tpu.vector_store %arg12[%c0_52, %c0_53], %115 {strides = array<i32>} : memref<32x128xf32, #tpu.memory_space<vmem>>, vector<32x128xf32>,
      } else {
      }
    } else {
    }
    return
  }
  func.func @transform_0(%arg0: i32, %arg1: i32) -> (i32, i32) {
    %c1_i32 = arith.constant 1 : i32
    %0 = arith.cmpi slt, %arg0, %c1_i32 : i32
    %c0_i32 = arith.constant 0 : i32
    %1 = arith.select %0, %c0_i32, %arg1 : i32
    %c0_i32_0 = arith.constant 0 : i32
    %c0_i32_1 = arith.constant 0 : i32
    return %1, %c0_i32_0 : i32, i32
  }
  func.func @transform_1(%arg0: i32, %arg1: i32) -> (i32, i32) {
    %c1_i32 = arith.constant 1 : i32
    %0 = arith.cmpi slt, %arg0, %c1_i32 : i32
    %c0_i32 = arith.constant 0 : i32
    %1 = arith.select %0, %c0_i32, %arg1 : i32
    %c0_i32_0 = arith.constant 0 : i32
    %c0_i32_1 = arith.constant 0 : i32
    return %1, %c0_i32_0 : i32, i32
  }
  func.func @transform_2(%arg0: i32, %arg1: i32) -> (i32, i32) {
    %c1_i32 = arith.constant 1 : i32
    %0 = arith.cmpi slt, %arg0, %c1_i32 : i32
    %c2_i32 = arith.constant 2 : i32
    %1 = arith.cmpi eq, %arg0, %c2_i32 : i32
    %2 = arith.ori %0, %1 : i1
    %c1_i32_0 = arith.constant 1 : i32
    %3 = arith.select %2, %arg1, %c1_i32_0 : i32
    %c0_i32 = arith.constant 0 : i32
    %c0_i32_1 = arith.constant 0 : i32
    return %3, %c0_i32 : i32, i32
  }
  func.func @transform_3(%arg0: i32, %arg1: i32) -> (i32, i32) {
    %c0_i32 = arith.constant 0 : i32
    %c0_i32_0 = arith.constant 0 : i32
    %c0_i32_1 = arith.constant 0 : i32
    return %c0_i32, %c0_i32_0 : i32, i32
  }
  func.func @transform_4(%arg0: i32, %arg1: i32) -> (i32, i32) {
    %c0_i32 = arith.constant 0 : i32
    %c0_i32_0 = arith.constant 0 : i32
    %c0_i32_1 = arith.constant 0 : i32
    return %c0_i32, %c0_i32_0 : i32, i32
  }
  func.func @transform_5(%arg0: i32, %arg1: i32) -> (i32, i32) {
    %c0_i32 = arith.constant 0 : i32
    %c0_i32_0 = arith.constant 0 : i32
    %c0_i32_1 = arith.constant 0 : i32
    return %c0_i32, %c0_i32_0 : i32, i32
  }
  func.func @transform_6(%arg0: i32, %arg1: i32) -> (i32, i32) {
    %c0_i32 = arith.constant 0 : i32
    %c0_i32_0 = arith.constant 0 : i32
    %c0_i32_1 = arith.constant 0 : i32
    return %c0_i32, %c0_i32_0 : i32, i32
  }
  func.func @transform_7(%arg0: i32, %arg1: i32) -> (i32, i32) {
    %c0_i32 = arith.constant 0 : i32
    %c0_i32_0 = arith.constant 0 : i32
    %c0_i32_1 = arith.constant 0 : i32
    return %c0_i32, %c0_i32_0 : i32, i32
  }
  func.func @transform_8(%arg0: i32, %arg1: i32) -> (i32, i32) {
    %c0_i32 = arith.constant 0 : i32
    %c0_i32_0 = arith.constant 0 : i32
    %c0_i32_1 = arith.constant 0 : i32
    return %c0_i32, %c0_i32_0 : i32, i32
  }
  func.func @transform_9(%arg0: i32, %arg1: i32) -> (i32, i32) {
    %c0_i32 = arith.constant 0 : i32
    %c0_i32_0 = arith.constant 0 : i32
    %c0_i32_1 = arith.constant 0 : i32
    return %c0_i32, %c0_i32_0 : i32, i32
  }
  func.func @transform_10(%arg0: i32, %arg1: i32) -> (i32, i32) {
    %c2_i32 = arith.constant 2 : i32
    %0 = arith.cmpi eq, %arg0, %c2_i32 : i32
    %c0_i32 = arith.constant 0 : i32
    %1 = arith.select %0, %arg1, %c0_i32 : i32
    %c0_i32_0 = arith.constant 0 : i32
    %c0_i32_1 = arith.constant 0 : i32
    return %1, %c0_i32_0 : i32, i32
  }
}

</mosaic_0001>

<llo_original>
// kernel: tpu_custom_call.1
$region0: #{tpu_custom_call.1}
  #allocation0 [shape = 'u32[]', space=smem, size = 0x4, offset = 0x4, fixed_abs, tag = 'smem constant byte address 0x4 - core index']
  #allocation1 [shape = 'u32[144,128]{1,0:T(1,128)}', space=vmem, size = 0x12000, scoped, tag = 'internal scratch']
  #allocation2 [shape = 'bf16[128,128]{1,0:T(8,128)(2,1)}', space=vmem, size = 0x8000, scoped, tag = 'scratch operand']
  #allocation3 [shape = 'f32[64,128]{1,0:T(8,128)}', space=vmem, size = 0x8000, scoped, tag = 'scratch operand']
  %s0 = inlined_call_operand.hbm [shape: bf16[64,64], index: 0, kind: input, shape index: {}]
  %s1 = inlined_call_operand.vmem [shape: f32[64,1], index: 1, kind: input, shape index: {}]
  %s2 = inlined_call_operand.vmem [shape: f32[64,128], index: 2, kind: input, shape index: {}]
  %s3 = inlined_call_operand.vmem [shape: f32[1,128], index: 3, kind: input, shape index: {}]
  %s4 = inlined_call_operand.hbm [shape: bf16[128,128], index: 4, kind: input, shape index: {}]
  %s5 = inlined_call_operand.vmem [shape: f32[1,128], index: 5, kind: input, shape index: {}]
  %s6 = inlined_call_operand.hbm [shape: bf16[128,128], index: 6, kind: input, shape index: {}]
  %s7 = inlined_call_operand.vmem [shape: f32[1,128], index: 7, kind: input, shape index: {}]
  %s8 = inlined_call_operand.hbm [shape: bf16[128,128], index: 8, kind: input, shape index: {}]
  %s9 = inlined_call_operand.vmem [shape: f32[1,128], index: 9, kind: input, shape index: {}]
  %s10 = inlined_call_operand.hbm [shape: f32[64,128], index: 10, kind: output, shape index: {}]
  %s11 = sld [smem:[#allocation0]]
  $region117: #{tpu_custom_call.1} parent=0
    _
  %s13 = ssub.s32 1, %s11
  %s14 = scalar_select 0, %s13, %s11
  $region1: #{tpu_custom_call.1} parent=0
    #allocation4 [shape = 'u8[16384]{0}', space=vmem, size = 0x4000, scoped, tag = 'input window, operand 0']
    #allocation5 [shape = 's32[2]{0}', space=sflag, size = 0x8, scoped, tag = 'scoped memory for tpu_custom_call.1']
    #allocation6 [shape = 's32[2]{0}', space=sflag, size = 0x8, scoped, tag = 'scoped memory for tpu_custom_call.1']
    #allocation7 [shape = 'u8[32768]{0}', space=vmem, size = 0x8000, scoped, tag = 'input window, operand 4, single buffered']
    #allocation8 [shape = 's32[1]{0}', space=sflag, size = 0x4, scoped, tag = 'scoped memory for tpu_custom_call.1']
    #allocation9 [shape = 'u8[32768]{0}', space=vmem, size = 0x8000, scoped, tag = 'input window, operand 6, single buffered']
    #allocation10 [shape = 'u8[32768]{0}', space=vmem, size = 0x8000, scoped, tag = 'input window, operand 8, single buffered']
    #allocation11 [shape = 's32[1]{0}', space=sflag, size = 0x4, scoped, tag = 'scoped memory for tpu_custom_call.1']
    #allocation12 [shape = 'u8[32768]{0}', space=vmem, size = 0x8000, scoped, tag = 'output window, operand 0']
    %15 = vsyncpa [#allocation5], 0
    %s16 = scalar_lea.sflag [#allocation5], 1
    %17 = vsyncpa %s16, 0
    %18 = vsyncpa [#allocation8], 0
    %19 = vsyncpa [#allocation11], 0
    %20 = vsyncpa [#allocation6], 0
    %s21 = scalar_lea.sflag [#allocation6], 1
    %22 = vsyncpa %s21, 0
    loop: start=0, step=1, limit=8
    $region2: #{tpu_custom_call.1} parent=1 // loop_pre_header
      _
    $region3: #{tpu_custom_call.1} parent=1 // loop_header
      %s24 = sphi 0, %s28
      %p25 = scmp.ge.s32.totalorder %s24, 8
      %s31 = sphi 0, %s43
      %s32 = sphi 0, %s39
      %s33 = sphi 0, %s31
      %s34 = sphi 0, %s32
      %s35 = sphi 0, %s33
      %s36 = sphi 0, %s34
      %s50 = sphi 0, %s52
      %s53 = sphi 0, %s50
      %s54 = sphi 0, %s53
      %s70 = sphi 0, %s54
      %s80 = sphi 0, %s82
      %s83 = sphi 0, %s80
      %s84 = sphi 0, %s83
      %s100 = sphi 0, %s84
      %s114 = sphi 0, %s116
      %s117 = sphi 0, %s114
      %s118 = sphi 0, %s117
      %s134 = sphi 0, %s118
      %s138 = sphi 0, %s138
      %s140 = sphi 0, %s138
      %s141 = sphi 0, %s140
      %s155 = sphi 0, %s141
      %s159 = sphi 0, %s159
      %s161 = sphi 0, %s159
      %s162 = sphi 0, %s161
      %s176 = sphi 0, %s162
      %s180 = sphi 0, %s180
      %s182 = sphi 0, %s180
      %s183 = sphi 0, %s182
      %s197 = sphi 0, %s183
      %s201 = sphi 0, %s201
      %s203 = sphi 0, %s201
      %s204 = sphi 0, %s203
      %s218 = sphi 0, %s204
      %s222 = sphi 0, %s222
      %s224 = sphi 0, %s222
      %s225 = sphi 0, %s224
      %s239 = sphi 0, %s225
      %s243 = sphi 0, %s243
      %s245 = sphi 0, %s243
      %s246 = sphi 0, %s245
      %s260 = sphi 0, %s246
      %s264 = sphi 0, %s264
      %s266 = sphi 0, %s264
      %s267 = sphi 0, %s266
      %s281 = sphi 0, %s267
      %s291 = sphi 0, %s293
      %s294 = sphi 0, %s291
      %s295 = sphi 0, %s294
      %s311 = sphi 0, %s295
    $region4: #{tpu_custom_call.1} parent=1 // loop_header_branch
      %27 = sbr.rel (%p25) target = $region8
    $region5: #{tpu_custom_call.1} parent=1 // loop_body
      %s29 = ssub.s32 %s24, 1
      %s30 = ssub.s32 %s24, 2
      %s37 = sadd.s32 1, %s32
      %p38 = scmp.ge.s32.totalorder %s37, 2
      %s39 = scalar_select %p38, 0, %s37
      %s40 = sadd.s32 1, %s31
      %s41 = scalar_select %p38, %s40, %s31
      %p42 = scmp.ge.s32.totalorder %s41, 3
      %s43 = scalar_select %p42, 0, %s41
      %p44 = scmp.lt.s32.totalorder %s31, 1
      %s45 = scalar_select %p44, 0, %s32
      %p46 = scmp.lt.s32.totalorder %s43, 1
      %s47 = scalar_select %p46, 0, %s39
      %s48 = ssub.s32 %s45, %s47
      %p49 = scmp.eq.s32.totalorder %s48, 0
      %s51 = sadd.s32 %s50, 1
      %s52 = scalar_select %p49, %s50, %s51
      %p55 = pneg %p49
      %p56 = scmp.eq.s32.totalorder %s24, 5
      %p57 = por %p55, %p56
      %p58 = scmp.ne.s32.totalorder %s50, %s53
      %p59 = scmp.eq.s32.totalorder %s24, 0
      %p60 = por %p58, %p59
      %p61 = scmp.ne.s32.totalorder %s50, %s53
      %p62 = scmp.eq.s32.totalorder %s29, 5
      %p63 = por %p61, %p62
      %p64 = scmp.ne.s32.totalorder %s53, %s54
      %p65 = scmp.eq.s32.totalorder %s29, 0
      %p66 = por %p64, %p65
      %p67 = scmp.ne.s32.totalorder %s53, %s54
      %p68 = scmp.eq.s32.totalorder %s30, 5
      %p69 = por %p67, %p68
      %p71 = scmp.ne.s32.totalorder %s54, %s70
      %p72 = scmp.eq.s32.totalorder %s30, 0
      %p73 = por %p71, %p72
      %p74 = scmp.lt.s32.totalorder %s31, 1
      %s75 = scalar_select %p74, 0, %s32
      %p76 = scmp.lt.s32.totalorder %s43, 1
      %s77 = scalar_select %p76, 0, %s39
      %s78 = ssub.s32 %s75, %s77
      %p79 = scmp.eq.s32.totalorder %s78, 0
      %s81 = sadd.s32 %s80, 1
      %s82 = scalar_select %p79, %s80, %s81
      %p85 = pneg %p79
      %p86 = scmp.eq.s32.totalorder %s24, 5
      %p87 = por %p85, %p86
      %p88 = scmp.ne.s32.totalorder %s80, %s83
      %p89 = scmp.eq.s32.totalorder %s24, 0
      %p90 = por %p88, %p89
      %p91 = scmp.ne.s32.totalorder %s80, %s83
      %p92 = scmp.eq.s32.totalorder %s29, 5
      %p93 = por %p91, %p92
      %p94 = scmp.ne.s32.totalorder %s83, %s84
      %p95 = scmp.eq.s32.totalorder %s29, 0
      %p96 = por %p94, %p95
      %p97 = scmp.ne.s32.totalorder %s83, %s84
      %p98 = scmp.eq.s32.totalorder %s30, 5
      %p99 = por %p97, %p98
      %p101 = scmp.ne.s32.totalorder %s84, %s100
      %p102 = scmp.eq.s32.totalorder %s30, 0
      %p103 = por %p101, %p102
      %p104 = scmp.lt.s32.totalorder %s31, 1
      %p105 = scmp.eq.s32.totalorder %s31, 2
      %p106 = por %p104, %p105
      %s107 = scalar_select %p106, %s32, 1
      %p108 = scmp.lt.s32.totalorder %s43, 1
      %p109 = scmp.eq.s32.totalorder %s43, 2
      %p110 = por %p108, %p109
      %s111 = scalar_select %p110, %s39, 1
      %s112 = ssub.s32 %s107, %s111
      %p113 = scmp.eq.s32.totalorder %s112, 0
      %s115 = sadd.s32 %s114, 1
      %s116 = scalar_select %p113, %s114, %s115
      %p119 = pneg %p113
      %p120 = scmp.eq.s32.totalorder %s24, 5
      %p121 = por %p119, %p120
      %p122 = scmp.ne.s32.totalorder %s114, %s117
      %p123 = scmp.eq.s32.totalorder %s24, 0
      %p124 = por %p122, %p123
      %p125 = scmp.ne.s32.totalorder %s114, %s117
      %p126 = scmp.eq.s32.totalorder %s29, 5
      %p127 = por %p125, %p126
      %p128 = scmp.ne.s32.totalorder %s117, %s118
      %p129 = scmp.eq.s32.totalorder %s29, 0
      %p130 = por %p128, %p129
      %p131 = scmp.ne.s32.totalorder %s117, %s118
      %p132 = scmp.eq.s32.totalorder %s30, 5
      %p133 = por %p131, %p132
      %p135 = scmp.ne.s32.totalorder %s118, %s134
      %p136 = scmp.eq.s32.totalorder %s30, 0
      %p137 = por %p135, %p136
      %s139 = sadd.s32 %s138, 1
      %p142 = scmp.eq.s32.totalorder %s24, 5
      %p143 = scmp.ne.s32.totalorder %s138, %s140
      %p144 = scmp.eq.s32.totalorder %s24, 0
      %p145 = por %p143, %p144
      %p146 = scmp.ne.s32.totalorder %s138, %s140
      %p147 = scmp.eq.s32.totalorder %s29, 5
      %p148 = por %p146, %p147
      %p149 = scmp.ne.s32.totalorder %s140, %s141
      %p150 = scmp.eq.s32.totalorder %s29, 0
      %p151 = por %p149, %p150
      %p152 = scmp.ne.s32.totalorder %s140, %s141
      %p153 = scmp.eq.s32.totalorder %s30, 5
      %p154 = por %p152, %p153
      %p156 = scmp.ne.s32.totalorder %s141, %s155
      %p157 = scmp.eq.s32.totalorder %s30, 0
      %p158 = por %p156, %p157
      %s160 = sadd.s32 %s159, 1
      %p163 = scmp.eq.s32.totalorder %s24, 5
      %p164 = scmp.ne.s32.totalorder %s159, %s161
      %p165 = scmp.eq.s32.totalorder %s24, 0
      %p166 = por %p164, %p165
      %p167 = scmp.ne.s32.totalorder %s159, %s161
      %p168 = scmp.eq.s32.totalorder %s29, 5
      %p169 = por %p167, %p168
      %p170 = scmp.ne.s32.totalorder %s161, %s162
      %p171 = scmp.eq.s32.totalorder %s29, 0
      %p172 = por %p170, %p171
      %p173 = scmp.ne.s32.totalorder %s161, %s162
      %p174 = scmp.eq.s32.totalorder %s30, 5
      %p175 = por %p173, %p174
      %p177 = scmp.ne.s32.totalorder %s162, %s176
      %p178 = scmp.eq.s32.totalorder %s30, 0
      %p179 = por %p177, %p178
      %s181 = sadd.s32 %s180, 1
      %p184 = scmp.eq.s32.totalorder %s24, 5
      %p185 = scmp.ne.s32.totalorder %s180, %s182
      %p186 = scmp.eq.s32.totalorder %s24, 0
      %p187 = por %p185, %p186
      %p188 = scmp.ne.s32.totalorder %s180, %s182
      %p189 = scmp.eq.s32.totalorder %s29, 5
      %p190 = por %p188, %p189
      %p191 = scmp.ne.s32.totalorder %s182, %s183
      %p192 = scmp.eq.s32.totalorder %s29, 0
      %p193 = por %p191, %p192
      %p194 = scmp.ne.s32.totalorder %s182, %s183
      %p195 = scmp.eq.s32.totalorder %s30, 5
      %p196 = por %p194, %p195
      %p198 = scmp.ne.s32.totalorder %s183, %s197
      %p199 = scmp.eq.s32.totalorder %s30, 0
      %p200 = por %p198, %p199
      %s202 = sadd.s32 %s201, 1
      %p205 = scmp.eq.s32.totalorder %s24, 5
      %p206 = scmp.ne.s32.totalorder %s201, %s203
      %p207 = scmp.eq.s32.totalorder %s24, 0
      %p208 = por %p206, %p207
      %p209 = scmp.ne.s32.totalorder %s201, %s203
      %p210 = scmp.eq.s32.totalorder %s29, 5
      %p211 = por %p209, %p210
      %p212 = scmp.ne.s32.totalorder %s203, %s204
      %p213 = scmp.eq.s32.totalorder %s29, 0
      %p214 = por %p212, %p213
      %p215 = scmp.ne.s32.totalorder %s203, %s204
      %p216 = scmp.eq.s32.totalorder %s30, 5
      %p217 = por %p215, %p216
      %p219 = scmp.ne.s32.totalorder %s204, %s218
      %p220 = scmp.eq.s32.totalorder %s30, 0
      %p221 = por %p219, %p220
      %s223 = sadd.s32 %s222, 1
      %p226 = scmp.eq.s32.totalorder %s24, 5
      %p227 = scmp.ne.s32.totalorder %s222, %s224
      %p228 = scmp.eq.s32.totalorder %s24, 0
      %p229 = por %p227, %p228
      %p230 = scmp.ne.s32.totalorder %s222, %s224
      %p231 = scmp.eq.s32.totalorder %s29, 5
      %p232 = por %p230, %p231
      %p233 = scmp.ne.s32.totalorder %s224, %s225
      %p234 = scmp.eq.s32.totalorder %s29, 0
      %p235 = por %p233, %p234
      %p236 = scmp.ne.s32.totalorder %s224, %s225
      %p237 = scmp.eq.s32.totalorder %s30, 5
      %p238 = por %p236, %p237
      %p240 = scmp.ne.s32.totalorder %s225, %s239
      %p241 = scmp.eq.s32.totalorder %s30, 0
      %p242 = por %p240, %p241
      %s244 = sadd.s32 %s243, 1
      %p247 = scmp.eq.s32.totalorder %s24, 5
      %p248 = scmp.ne.s32.totalorder %s243, %s245
      %p249 = scmp.eq.s32.totalorder %s24, 0
      %p250 = por %p248, %p249
      %p251 = scmp.ne.s32.totalorder %s243, %s245
      %p252 = scmp.eq.s32.totalorder %s29, 5
      %p253 = por %p251, %p252
      %p254 = scmp.ne.s32.totalorder %s245, %s246
      %p255 = scmp.eq.s32.totalorder %s29, 0
      %p256 = por %p254, %p255
      %p257 = scmp.ne.s32.totalorder %s245, %s246
      %p258 = scmp.eq.s32.totalorder %s30, 5
      %p259 = por %p257, %p258
      %p261 = scmp.ne.s32.totalorder %s246, %s260
      %p262 = scmp.eq.s32.totalorder %s30, 0
      %p263 = por %p261, %p262
      %s265 = sadd.s32 %s264, 1
      %p268 = scmp.eq.s32.totalorder %s24, 5
      %p269 = scmp.ne.s32.totalorder %s264, %s266
      %p270 = scmp.eq.s32.totalorder %s24, 0
      %p271 = por %p269, %p270
      %p272 = scmp.ne.s32.totalorder %s264, %s266
      %p273 = scmp.eq.s32.totalorder %s29, 5
      %p274 = por %p272, %p273
      %p275 = scmp.ne.s32.totalorder %s266, %s267
      %p276 = scmp.eq.s32.totalorder %s29, 0
      %p277 = por %p275, %p276
      %p278 = scmp.ne.s32.totalorder %s266, %s267
      %p279 = scmp.eq.s32.totalorder %s30, 5
      %p280 = por %p278, %p279
      %p282 = scmp.ne.s32.totalorder %s267, %s281
      %p283 = scmp.eq.s32.totalorder %s30, 0
      %p284 = por %p282, %p283
      %p285 = scmp.eq.s32.totalorder %s31, 2
      %s286 = scalar_select %p285, %s32, 0
      %p287 = scmp.eq.s32.totalorder %s43, 2
      %s288 = scalar_select %p287, %s39, 0
      %s289 = ssub.s32 %s286, %s288
      %p290 = scmp.eq.s32.totalorder %s289, 0
      %s292 = sadd.s32 %s291, 1
      %s293 = scalar_select %p290, %s291, %s292
      %p296 = pneg %p290
      %p297 = scmp.eq.s32.totalorder %s24, 5
      %p298 = por %p296, %p297
      %p299 = scmp.ne.s32.totalorder %s291, %s294
      %p300 = scmp.eq.s32.totalorder %s24, 0
      %p301 = por %p299, %p300
      %p302 = scmp.ne.s32.totalorder %s291, %s294
      %p303 = scmp.eq.s32.totalorder %s29, 5
      %p304 = por %p302, %p303
      %p305 = scmp.ne.s32.totalorder %s294, %s295
      %p306 = scmp.eq.s32.totalorder %s29, 0
      %p307 = por %p305, %p306
      %p308 = scmp.ne.s32.totalorder %s294, %s295
      %p309 = scmp.eq.s32.totalorder %s30, 5
      %p310 = por %p308, %p309
      %p312 = scmp.ne.s32.totalorder %s295, %s311
      %p313 = scmp.eq.s32.totalorder %s30, 0
      %p314 = por %p312, %p313
      %p315 = scmp.le.s32.totalorder 1, %s24
      %p316 = scmp.lt.s32.totalorder %s24, 7
      %p317 = pnand %p315, %p316
      %p318 = pneg %p317
      // Predicated region
      $region9: #{tpu_custom_call.1} parent=5 // pred_check
        _
      $region10: #{tpu_custom_call.1} parent=5 // pred_check_branch
        %320 = sbr.rel (%p317) target = $region12
      $region11: #{tpu_custom_call.1} parent=5 // pred_region
        %s321 = ssub.s32 %s24, 1
        // Predicated region
        $region13: #{tpu_custom_call.1} parent=11 // pred_check
          %p322 = pneg %p151
        $region14: #{tpu_custom_call.1} parent=11 // pred_check_branch
          %324 = sbr.rel (%p322) target = $region16
        $region15: #{tpu_custom_call.1} parent=11 // pred_region
          _
        $region16: #{tpu_custom_call.1} parent=11 // pred_fallthru
          _
        // Predicated region
        $region17: #{tpu_custom_call.1} parent=11 // pred_check
          %p325 = pneg %p172
        $region18: #{tpu_custom_call.1} parent=11 // pred_check_branch
          %327 = sbr.rel (%p325) target = $region20
        $region19: #{tpu_custom_call.1} parent=11 // pred_region
          %s329 = ssub.s32 1024, 1024
          %330 = vsyncadd [#allocation8], %s329
          %s331 = sshll.u32 [#allocation7], 4
          %s332 = int_to_ptr.vmem [resolvable:$true] %s331
          %337 = dma.hbm_to_vmem [thread:$0]  %s4, 1024, %s332, [#allocation8], 64, 64, 4
        $region20: #{tpu_custom_call.1} parent=11 // pred_fallthru
          _
        // Predicated region
        $region21: #{tpu_custom_call.1} parent=11 // pred_check
          %p338 = pneg %p193
        $region22: #{tpu_custom_call.1} parent=11 // pred_check_branch
          %340 = sbr.rel (%p338) target = $region24
        $region23: #{tpu_custom_call.1} parent=11 // pred_region
          _
        $region24: #{tpu_custom_call.1} parent=11 // pred_fallthru
          _
        // Predicated region
        $region25: #{tpu_custom_call.1} parent=11 // pred_check
          %p341 = pneg %p214
        $region26: #{tpu_custom_call.1} parent=11 // pred_check_branch
          %343 = sbr.rel (%p341) target = $region28
        $region27: #{tpu_custom_call.1} parent=11 // pred_region
          %s345 = ssub.s32 1024, 1024
          %346 = vsyncadd [#allocation8], %s345
          %s347 = sshll.u32 [#allocation9], 4
          %s348 = int_to_ptr.vmem [resolvable:$true] %s347
          %353 = dma.hbm_to_vmem [thread:$0]  %s6, 1024, %s348, [#allocation8], 64, 64, 4
        $region28: #{tpu_custom_call.1} parent=11 // pred_fallthru
          _
        // Predicated region
        $region29: #{tpu_custom_call.1} parent=11 // pred_check
          %p354 = pneg %p235
        $region30: #{tpu_custom_call.1} parent=11 // pred_check_branch
          %356 = sbr.rel (%p354) target = $region32
        $region31: #{tpu_custom_call.1} parent=11 // pred_region
          _
        $region32: #{tpu_custom_call.1} parent=11 // pred_fallthru
          _
        // Predicated region
        $region33: #{tpu_custom_call.1} parent=11 // pred_check
          %p357 = pneg %p256
        $region34: #{tpu_custom_call.1} parent=11 // pred_check_branch
          %359 = sbr.rel (%p357) target = $region36
        $region35: #{tpu_custom_call.1} parent=11 // pred_region
          %s361 = ssub.s32 1024, 1024
          %362 = vsyncadd [#allocation11], %s361
          %s363 = sshll.u32 [#allocation10], 4
          %s364 = int_to_ptr.vmem [resolvable:$true] %s363
          %369 = dma.hbm_to_vmem [thread:$0]  %s8, 1024, %s364, [#allocation11], 64, 64, 4
        $region36: #{tpu_custom_call.1} parent=11 // pred_fallthru
          _
        // Predicated region
        $region37: #{tpu_custom_call.1} parent=11 // pred_check
          %p370 = pneg %p277
        $region38: #{tpu_custom_call.1} parent=11 // pred_check_branch
          %372 = sbr.rel (%p370) target = $region40
        $region39: #{tpu_custom_call.1} parent=11 // pred_region
          _
        $region40: #{tpu_custom_call.1} parent=11 // pred_fallthru
          _
      $region12: #{tpu_custom_call.1} parent=5 // pred_fallthru
        _
      %p373 = scmp.lt.s32.totalorder %s24, 6
      // Predicated region
      $region41: #{tpu_custom_call.1} parent=5 // pred_check
        %p374 = pneg %p373
      $region42: #{tpu_custom_call.1} parent=5 // pred_check_branch
        %376 = sbr.rel (%p374) target = $region44
      $region43: #{tpu_custom_call.1} parent=5 // pred_region
        // Predicated region
        $region45: #{tpu_custom_call.1} parent=43 // pred_check
          %p377 = pneg %p60
        $region46: #{tpu_custom_call.1} parent=43 // pred_check_branch
          %379 = sbr.rel (%p377) target = $region48
        $region47: #{tpu_custom_call.1} parent=43 // pred_region
          %s380 = sand.u32 %s50, 1
          %s381 = scalar_lea.sflag [#allocation5], %s380
          %s382 = sand.u32 %s50, 1
          %s383 = smul.addr %s382, 16
          %s384 = scalar_lea.vmem [#allocation4], %s383
          %p385 = scmp.lt.s32.totalorder %s31, 1
          %s386 = scalar_select %p385, 0, %s32
          %s387 = smul.u32 4, %s386
          %s389 = ssub.s32 256, 256
          %390 = vsyncadd %s381, %s389
          %s391 = smul.addr %s387, 64
          %s392 = scalar_lea.hbm %s0, %s391
          %s393 = sshll.u32 %s384, 4
          %s394 = int_to_ptr.vmem [resolvable:$true] %s393
          %399 = dma.hbm_to_vmem [thread:$0]  %s392, 256, %s394, %s381, 64, 64, 4
        $region48: #{tpu_custom_call.1} parent=43 // pred_fallthru
          _
        // Predicated region
        $region49: #{tpu_custom_call.1} parent=43 // pred_check
          %p400 = pneg %p90
        $region50: #{tpu_custom_call.1} parent=43 // pred_check_branch
          %402 = sbr.rel (%p400) target = $region52
        $region51: #{tpu_custom_call.1} parent=43 // pred_region
          %p403 = scmp.lt.s32.totalorder %s31, 1
          %s404 = scalar_select %p403, 0, %s32
          %s405 = smul.u32 4, %s404
          %p406 = scmp.lt.s32.totalorder %s405, 7
          %s407 = scalar_select %p406, %s405, 7
          %s408 = smul.addr %s407, 8
          %s409 = scalar_lea.vmem %s1, %s408
          %p410 = scmp.lt.s32.totalorder %s31, 1
          %s411 = scalar_select %p410, 0, %s32
          %s412 = smul.u32 4, %s411
        $region52: #{tpu_custom_call.1} parent=43 // pred_fallthru
          _
        // Predicated region
        $region53: #{tpu_custom_call.1} parent=43 // pred_check
          %p413 = pneg %p124
        $region54: #{tpu_custom_call.1} parent=43 // pred_check_branch
          %415 = sbr.rel (%p413) target = $region56
        $region55: #{tpu_custom_call.1} parent=43 // pred_region
          %p416 = scmp.lt.s32.totalorder %s31, 1
          %p417 = scmp.eq.s32.totalorder %s31, 2
          %p418 = por %p416, %p417
          %s419 = scalar_select %p418, %s32, 1
          %s420 = smul.u32 4, %s419
          %p421 = scmp.lt.s32.totalorder %s420, 7
          %s422 = scalar_select %p421, %s420, 7
          %s423 = smul.addr %s422, 8
          %s424 = scalar_lea.vmem %s2, %s423
          %p425 = scmp.lt.s32.totalorder %s31, 1
          %p426 = scmp.eq.s32.totalorder %s31, 2
          %p427 = por %p425, %p426
          %s428 = scalar_select %p427, %s32, 1
          %s429 = smul.u32 4, %s428
        $region56: #{tpu_custom_call.1} parent=43 // pred_fallthru
          _
      $region44: #{tpu_custom_call.1} parent=5 // pred_fallthru
        _
      %p430 = scmp.le.s32.totalorder 1, %s24
      %p431 = scmp.lt.s32.totalorder %s24, 7
      %p432 = pnand %p430, %p431
      %p433 = pneg %p432
      // Predicated region
      $region57: #{tpu_custom_call.1} parent=5 // pred_check
        _
      $region58: #{tpu_custom_call.1} parent=5 // pred_check_branch
        %435 = sbr.rel (%p432) target = $region60
      $region59: #{tpu_custom_call.1} parent=5 // pred_region
        %s436 = ssub.s32 %s24, 1
        %s437 = sand.u32 %s53, 1
        %s438 = scalar_lea.sflag [#allocation5], %s437
        %s439 = sand.u32 %s53, 1
        %s440 = smul.addr %s439, 16
        %s441 = scalar_lea.vmem [#allocation4], %s440
        // Predicated region
        $region61: #{tpu_custom_call.1} parent=59 // pred_check
          %p442 = pneg %p66
        $region62: #{tpu_custom_call.1} parent=59 // pred_check_branch
          %444 = sbr.rel (%p442) target = $region64
        $region63: #{tpu_custom_call.1} parent=59 // pred_region
          %445 = dma.done %s438, 256
        $region64: #{tpu_custom_call.1} parent=59 // pred_fallthru
          _
        // Predicated region
        $region65: #{tpu_custom_call.1} parent=59 // pred_check
          %p446 = pneg %p172
        $region66: #{tpu_custom_call.1} parent=59 // pred_check_branch
          %448 = sbr.rel (%p446) target = $region68
        $region67: #{tpu_custom_call.1} parent=59 // pred_region
          %449 = dma.done [#allocation8], 1024
        $region68: #{tpu_custom_call.1} parent=59 // pred_fallthru
          _
        // Predicated region
        $region69: #{tpu_custom_call.1} parent=59 // pred_check
          %p450 = pneg %p214
        $region70: #{tpu_custom_call.1} parent=59 // pred_check_branch
          %452 = sbr.rel (%p450) target = $region72
        $region71: #{tpu_custom_call.1} parent=59 // pred_region
          %453 = dma.done [#allocation8], 1024
        $region72: #{tpu_custom_call.1} parent=59 // pred_fallthru
          _
        // Predicated region
        $region73: #{tpu_custom_call.1} parent=59 // pred_check
          %p454 = pneg %p256
        $region74: #{tpu_custom_call.1} parent=59 // pred_check_branch
          %456 = sbr.rel (%p454) target = $region76
        $region75: #{tpu_custom_call.1} parent=59 // pred_region
          %457 = dma.done [#allocation11], 1024
        $region76: #{tpu_custom_call.1} parent=59 // pred_fallthru
          _
        %s458 = sand.u32 %s53, 1
        %s459 = scalar_lea.sflag [#allocation5], %s458
        %s460 = sand.u32 %s53, 1
        %s461 = smul.addr %s460, 16
        %s462 = scalar_lea.vmem [#allocation4], %s461
        %p463 = pneg %p66
        %p464 = pneg %p63
        %p465 = scmp.lt.s32.totalorder %s33, 1
        %s466 = scalar_select %p465, 0, %s34
        %s467 = smul.u32 4, %s466
        %p468 = scmp.lt.s32.totalorder %s467, 7
        %s469 = scalar_select %p468, %s467, 7
        %s470 = smul.addr %s469, 8
        %s471 = scalar_lea.vmem %s1, %s470
        %p472 = pneg %p96
        %p473 = pneg %p93
        %p474 = scmp.lt.s32.totalorder %s33, 1
        %p475 = scmp.eq.s32.totalorder %s33, 2
        %p476 = por %p474, %p475
        %s477 = scalar_select %p476, %s34, 1
        %s478 = smul.u32 4, %s477
        %p479 = scmp.lt.s32.totalorder %s478, 7
        %s480 = scalar_select %p479, %s478, 7
        %s481 = smul.addr %s480, 8
        %s482 = scalar_lea.vmem %s2, %s481
        %p483 = pneg %p130
        %p484 = pneg %p127
        %p485 = pneg %p151
        %p486 = pneg %p148
        %p487 = pneg %p172
        %p488 = pneg %p169
        %p489 = pneg %p193
        %p490 = pneg %p190
        %p491 = pneg %p214
        %p492 = pneg %p211
        %p493 = pneg %p235
        %p494 = pneg %p232
        %p495 = pneg %p256
        %p496 = pneg %p253
        %p497 = pneg %p277
        %p498 = pneg %p274
        %p499 = pneg %p307
        %p500 = pneg %p304
        %s501 = sand.u32 %s294, 1
        %s502 = scalar_lea.sflag [#allocation6], %s501
        %s503 = sand.u32 %s294, 1
        %s504 = smul.addr %s503, 32
        %s505 = scalar_lea.vmem [#allocation12], %s504
        %p506 = scmp.lt.s32.totalorder %s33, 1
        %s507 = scalar_select %p506, 0, %s34
        %s508 = smul.u32 4, %s507
        %p509 = scmp.lt.s32.totalorder %s33, 1
        %s510 = scalar_select %p509, 0, %s34
        %s511 = smul.u32 4, %s510
        %p512 = scmp.lt.s32.totalorder %s511, 7
        %s513 = scalar_select %p512, %s511, 7
        %s514 = smul.addr %s513, 8
        %s515 = scalar_lea.vmem %s1, %s514
        %p516 = scmp.lt.s32.totalorder %s33, 1
        %s517 = scalar_select %p516, 0, %s34
        %s518 = smul.u32 4, %s517
        %p519 = scmp.lt.s32.totalorder %s33, 1
        %p520 = scmp.eq.s32.totalorder %s33, 2
        %p521 = por %p519, %p520
        %s522 = scalar_select %p521, %s34, 1
        %s523 = smul.u32 4, %s522
        %p524 = scmp.lt.s32.totalorder %s523, 7
        %s525 = scalar_select %p524, %s523, 7
        %s526 = smul.addr %s525, 8
        %s527 = scalar_lea.vmem %s2, %s526
        %p528 = scmp.lt.s32.totalorder %s33, 1
        %p529 = scmp.eq.s32.totalorder %s33, 2
        %p530 = por %p528, %p529
        %s531 = scalar_select %p530, %s34, 1
        %s532 = smul.u32 4, %s531
        %p533 = scmp.eq.s32.totalorder %s33, 2
        %s534 = scalar_select %p533, %s34, 0
        %s535 = smul.u32 4, %s534
        %s537 = smul.u32 %s34, 32
        %s538 = scvt.s32.f32 %s33
        %v539 = vlaneseq
        %v540 = vand.u32 %v539, 127
        %vm541 = vcmp.eq.s32.totalorder %v540, 127
        %v542 = vsel %vm541, 1, 0
        %v543 = vcvt.s32.f32 %v542
        %p544 = scmp.eq.s32.totalorder %s33, 0
        // Predicated region
        $region77: #{tpu_custom_call.1} parent=59 // pred_check
          %p545 = pneg %p544
        $region78: #{tpu_custom_call.1} parent=59 // pred_check_branch
          %547 = sbr.rel (%p545) target = $region80
        $region79: #{tpu_custom_call.1} parent=59 // pred_region
          %v548 = vld [vmem:[%s527] sm:$0xff]
          %v549 = vld [vmem:[%s527 + $0x8] sm:$0xff]
          %v550 = vld [vmem:[%s527 + $0x10] sm:$0xff]
          %v551 = vld [vmem:[%s527 + $0x18] sm:$0xff]
          %p552 = scmp.lt.s32.totalorder %s33, 2
          // Predicated region
          $region81: #{tpu_custom_call.1} parent=79 // pred_check
            %p553 = pneg %p552
          $region82: #{tpu_custom_call.1} parent=79 // pred_check_branch
            %555 = sbr.rel (%p553) target = $region84
          $region83: #{tpu_custom_call.1} parent=79 // pred_region
            %p556 = scmp.lt.s32.totalorder %s33, 0
            %s557 = ssub.s32 0, %s33
            %s558 = scalar_select %p556, %s557, %s33
            %s559 = sand.u32 %s558, 1
            %s560 = ssub.s32 0, %s559
            %s561 = scalar_select %p556, %s560, %s559
            %p562 = scmp.ne.s32.totalorder %s561, 0
            %p563 = scmp.lt.s32.totalorder %s561, 0
            %p564 = pnand %p563, %p562
            %p565 = pneg %p564
            %s566 = sadd.s32 %s561, 2
            %s567 = scalar_select %p565, %s566, %s561
            %s568 = smul.u32 %s567, 64
            %s569 = sadd.s32 %s568, %s537
            %v570 = vpack.c.bf16 %v549, %v548
            %v571 = vpack.c.bf16 %v551, %v550
            %v574 = vunpack.c.l.b16 %v570
            %v575 = vunpack.c.h.b16 %v570
            %v576 = vunpack.c.l.b16 %v571
            %v577 = vunpack.c.h.b16 %v571
            %v578 = vpack.c.b16 %v574, %v574
            %v579 = vpack.c.b16 %v575, %v575
            %v580 = vpack.c.b16 %v576, %v576
            %v581 = vpack.c.b16 %v577, %v577
            %s586 = sshra.s32 %s569, 3
            %s587 = sand.u32 %s569, 7
            %s588 = smul.addr %s586, 4
            %s589 = scalar_lea.vmem [#allocation2], %s588
            %590 = vst [vmem:[%s589] sm:$0xf] %v578
            %591 = vst [vmem:[%s589 + $0x4] sm:$0xf] %v579
            %592 = vst [vmem:[%s589 + $0x8] sm:$0xf] %v580
            %593 = vst [vmem:[%s589 + $0xc] sm:$0xf] %v581
          $region84: #{tpu_custom_call.1} parent=79 // pred_fallthru
            _
          %s594 = scalar_lea.vmem [#allocation3], %s537
          %595 = vst [vmem:[%s594] sm:$0xff] 0.0
          %596 = vst [vmem:[%s594 + $0x8] sm:$0xff] 0.0
          %597 = vst [vmem:[%s594 + $0x10] sm:$0xff] 0.0
          %598 = vst [vmem:[%s594 + $0x18] sm:$0xff] 0.0
          %v599 = vld [vmem:[%s594] sm:$0xff]
          %v600 = vld [vmem:[%s594 + $0x8] sm:$0xff]
          %v601 = vld [vmem:[%s594 + $0x10] sm:$0xff]
          %v602 = vld [vmem:[%s594 + $0x18] sm:$0xff]
          %s603 = ssub.f32 %s538, 0.5
          %v604 = vstv %s603
          %vm605 = vcmp.gt.f32.partialorder %v599, %v604
          %vm606 = vcmp.gt.f32.partialorder %v600, %v604
          %vm607 = vcmp.gt.f32.partialorder %v601, %v604
          %vm608 = vcmp.gt.f32.partialorder %v602, %v604
          %v609 = vld [vmem:[%s3] sm:$0x1]
          %v611 = vlaneseq
          %v612 = vshrl.u32 %v611, 7
          %v613 = vsub.s32 0, %v612
          %v614 = vrot.slane %v609, %v613
          %v616 = vsub.f32 %v548, %v614
          %v617 = vsub.f32 %v549, %v614
          %v618 = vsub.f32 %v550, %v614
          %v619 = vsub.f32 %v551, %v614
          %v620 = vmul.f32 %v616, %v616
          %v621 = vmul.f32 %v617, %v617
          %v622 = vmul.f32 %v618, %v618
          %v623 = vmul.f32 %v619, %v619
          %624 = vadd.xlane.f32.xlu0 %v620
          %v625 = vpop.xlane.xlu0 %624
          %626 = vadd.xlane.f32.xlu0 %v621
          %v627 = vpop.xlane.xlu0 %626
          %628 = vadd.xlane.f32.xlu0 %v622
          %v629 = vpop.xlane.xlu0 %628
          %630 = vadd.xlane.f32.xlu0 %v623
          %v631 = vpop.xlane.xlu0 %630
          %vm632 = vcmp.lt.f32.partialorder %v625, 0.0025
          %vm633 = vcmp.lt.f32.partialorder %v627, 0.0025
          %vm634 = vcmp.lt.f32.partialorder %v629, 0.0025
          %vm635 = vcmp.lt.f32.partialorder %v631, 0.0025
          %vm636 = vmand %vm632, %vm605
          %vm637 = vmand %vm633, %vm606
          %vm638 = vmand %vm634, %vm607
          %vm639 = vmand %vm635, %vm608
          %vm640 = vmxor %vm636, 1
          %vm641 = vmxor %vm637, 1
          %vm642 = vmxor %vm638, 1
          %vm643 = vmxor %vm639, 1
          %vm644 = vmand %vm605, %vm640
          %vm645 = vmand %vm606, %vm641
          %vm646 = vmand %vm607, %vm642
          %vm647 = vmand %vm608, %vm643
          %v648 = vadd.f32 %v548, %v543
          %v649 = vadd.f32 %v549, %v543
          %v650 = vadd.f32 %v550, %v543
          %v651 = vadd.f32 %v551, %v543
          %v652 = vsel %vm644, 1, 0
          %v653 = vsel %vm645, 1, 0
          %v654 = vsel %vm646, 1, 0
          %v655 = vsel %vm647, 1, 0
          %656 = vset.pattern.permute.xlu0 127
          %657 = vperm.xlu0 %656, %v652
          %v658 = vpop.permute.xlu0 %657
          %659 = vset.pattern.permute.xlu0 127
          %660 = vperm.xlu0 %659, %v653
          %v661 = vpop.permute.xlu0 %660
          %662 = vset.pattern.permute.xlu0 127
          %663 = vperm.xlu0 %662, %v654
          %v664 = vpop.permute.xlu0 %663
          %665 = vset.pattern.permute.xlu0 127
          %666 = vperm.xlu0 %665, %v655
          %v667 = vpop.permute.xlu0 %666
          %vm668 = vcmp.eq.s32.totalorder %v658, 1
          %vm669 = vcmp.eq.s32.totalorder %v661, 1
          %vm670 = vcmp.eq.s32.totalorder %v664, 1
          %vm671 = vcmp.eq.s32.totalorder %v667, 1
          %v672 = vsel %vm668, %v648, 0.0
          %v673 = vsel %vm669, %v649, 0.0
          %v674 = vsel %vm670, %v650, 0.0
          %v675 = vsel %vm671, %v651, 0.0
          %v676 = vadd.f32 %v599, %v672
          %v677 = vadd.f32 %v600, %v673
          %v678 = vadd.f32 %v601, %v674
          %v679 = vadd.f32 %v602, %v675
          %680 = vst [vmem:[%s594] sm:$0xff] %v676
          %681 = vst [vmem:[%s594 + $0x8] sm:$0xff] %v677
          %682 = vst [vmem:[%s594 + $0x10] sm:$0xff] %v678
          %683 = vst [vmem:[%s594 + $0x18] sm:$0xff] %v679
          %p684 = scmp.eq.s32.totalorder %s33, 2
          // Predicated region
          $region85: #{tpu_custom_call.1} parent=79 // pred_check
            %p685 = pneg %p684
          $region86: #{tpu_custom_call.1} parent=79 // pred_check_branch
            %687 = sbr.rel (%p685) target = $region88
          $region87: #{tpu_custom_call.1} parent=79 // pred_region
            %v688 = vld [vmem:[%s527] sm:$0xff]
            %v689 = vld [vmem:[%s527 + $0x8] sm:$0xff]
            %v690 = vld [vmem:[%s527 + $0x10] sm:$0xff]
            %v691 = vld [vmem:[%s527 + $0x18] sm:$0xff]
            %v692 = vmax.f32 %v676, 1.0
            %v693 = vmax.f32 %v677, 1.0
            %v694 = vmax.f32 %v678, 1.0
            %v695 = vmax.f32 %v679, 1.0
            %v696 = vmul.f32 %v676, 0.85
            %v697 = vmul.f32 %v677, 0.85
            %v698 = vmul.f32 %v678, 0.85
            %v699 = vmul.f32 %v679, 0.85
            %701 = vset.pattern.permute.xlu0 127
            %702 = vperm.xlu0 %701, %v692
            %v703 = vpop.permute.xlu0 %702
            %706 = vset.pattern.permute.xlu0 127
            %707 = vperm.xlu0 %706, %v693
            %v708 = vpop.permute.xlu0 %707
            %711 = vset.pattern.permute.xlu0 127
            %712 = vperm.xlu0 %711, %v694
            %v713 = vpop.permute.xlu0 %712
            %716 = vset.pattern.permute.xlu0 127
            %717 = vperm.xlu0 %716, %v695
            %v718 = vpop.permute.xlu0 %717
            %v720 = vrcp.pop %v703
            %v721 = vmul.f32 %v696, %v720
            %v722 = vrcp.pop %v708
            %v723 = vmul.f32 %v697, %v722
            %v724 = vrcp.pop %v713
            %v725 = vmul.f32 %v698, %v724
            %v726 = vrcp.pop %v718
            %v727 = vmul.f32 %v699, %v726
            %v728 = vmul.f32 %v688, 0.15
            %v729 = vmul.f32 %v689, 0.15
            %v730 = vmul.f32 %v690, 0.15
            %v731 = vmul.f32 %v691, 0.15
            %v732 = vadd.f32 %v721, %v728
            %v733 = vadd.f32 %v723, %v729
            %v734 = vadd.f32 %v725, %v730
            %v735 = vadd.f32 %v727, %v731
            %vm736 = vcmp.lt.f32.partialorder %v676, 0.5
            %vm737 = vcmp.lt.f32.partialorder %v677, 0.5
            %vm738 = vcmp.lt.f32.partialorder %v678, 0.5
            %vm739 = vcmp.lt.f32.partialorder %v679, 0.5
            %v740 = vsel %vm736, 1, 0
            %v741 = vsel %vm737, 1, 0
            %v742 = vsel %vm738, 1, 0
            %v743 = vsel %vm739, 1, 0
            %744 = vset.pattern.permute.xlu0 127
            %745 = vperm.xlu0 %744, %v740
            %v746 = vpop.permute.xlu0 %745
            %747 = vset.pattern.permute.xlu0 127
            %748 = vperm.xlu0 %747, %v741
            %v749 = vpop.permute.xlu0 %748
            %750 = vset.pattern.permute.xlu0 127
            %751 = vperm.xlu0 %750, %v742
            %v752 = vpop.permute.xlu0 %751
            %753 = vset.pattern.permute.xlu0 127
            %754 = vperm.xlu0 %753, %v743
            %v755 = vpop.permute.xlu0 %754
            %vm756 = vcmp.eq.s32.totalorder %v746, 1
            %vm757 = vcmp.eq.s32.totalorder %v749, 1
            %vm758 = vcmp.eq.s32.totalorder %v752, 1
            %vm759 = vcmp.eq.s32.totalorder %v755, 1
            %v760 = vsel %vm756, %v688, %v732
            %v761 = vsel %vm757, %v689, %v733
            %v762 = vsel %vm758, %v690, %v734
            %v763 = vsel %vm759, %v691, %v735
            %v764 = vpack.c.bf16 %v761, %v760
            %v765 = vpack.c.bf16 %v763, %v762
            %v766 = vld [vmem:[#allocation7] sm:$0xf]
            %v767 = vld [vmem:[#allocation7 + $0x4] sm:$0xf]
            %v768 = vld [vmem:[#allocation7 + $0x8] sm:$0xf]
            %v769 = vld [vmem:[#allocation7 + $0xc] sm:$0xf]
            %v770 = vld [vmem:[#allocation7 + $0x10] sm:$0xf]
            %v771 = vld [vmem:[#allocation7 + $0x14] sm:$0xf]
            %v772 = vld [vmem:[#allocation7 + $0x18] sm:$0xf]
            %v773 = vld [vmem:[#allocation7 + $0x1c] sm:$0xf]
            %v774 = vld [vmem:[#allocation7 + $0x20] sm:$0xf]
            %v775 = vld [vmem:[#allocation7 + $0x24] sm:$0xf]
            %v776 = vld [vmem:[#allocation7 + $0x28] sm:$0xf]
            %v777 = vld [vmem:[#allocation7 + $0x2c] sm:$0xf]
            %v778 = vld [vmem:[#allocation7 + $0x30] sm:$0xf]
            %v779 = vld [vmem:[#allocation7 + $0x34] sm:$0xf]
            %v780 = vld [vmem:[#allocation7 + $0x38] sm:$0xf]
            %v781 = vld [vmem:[#allocation7 + $0x3c] sm:$0xf]
            %v782 = vld [vmem:[%s5] sm:$0x1]
            %v784 = vlaneseq
            %v785 = vshrl.u32 %v784, 7
            %v786 = vsub.s32 0, %v785
            %v787 = vrot.slane %v782, %v786
            %v805 = vunpack.c.l.b16 %v766
            %v806 = vunpack.c.l.b16 %v767
            %v807 = vunpack.c.l.b16 %v768
            %v808 = vunpack.c.l.b16 %v769
            %v809 = vunpack.c.l.b16 %v770
            %v810 = vunpack.c.l.b16 %v771
            %v811 = vunpack.c.l.b16 %v772
            %v812 = vunpack.c.l.b16 %v773
            %v813 = vunpack.c.l.b16 %v774
            %v814 = vunpack.c.l.b16 %v775
            %v815 = vunpack.c.l.b16 %v776
            %v816 = vunpack.c.l.b16 %v777
            %v817 = vunpack.c.l.b16 %v778
            %v818 = vunpack.c.l.b16 %v779
            %v819 = vunpack.c.l.b16 %v780
            %v820 = vunpack.c.l.b16 %v781
            %v821 = vpack.c.b16 %v806, %v805
            %v822 = vpack.c.b16 %v808, %v807
            %v823 = vpack.c.b16 %v810, %v809
            %v824 = vpack.c.b16 %v812, %v811
            %v825 = vpack.c.b16 %v814, %v813
            %v826 = vpack.c.b16 %v816, %v815
            %v827 = vpack.c.b16 %v818, %v817
            %v828 = vpack.c.b16 %v820, %v819
            %837 = vmatprep.subr.bf16.mxu0 0
            %838 = vmatpush1.bf16.msra.mxu0 %v828
            %839 = vmatprep.subr.bf16.mxu0 0
            %840 = vmatpush1.bf16.msra.mxu0 %v827
            %841 = vmatprep.subr.bf16.mxu0 0
            %842 = vmatpush1.bf16.msra.mxu0 %v826
            %843 = vmatprep.subr.bf16.mxu0 0
            %844 = vmatpush1.bf16.msra.mxu0 %v825
            %845 = vmatprep.subr.bf16.mxu0 0
            %846 = vmatpush1.bf16.msra.mxu0 %v824
            %847 = vmatprep.subr.bf16.mxu0 0
            %848 = vmatpush1.bf16.msra.mxu0 %v823
            %849 = vmatprep.subr.bf16.mxu0 0
            %850 = vmatpush1.bf16.msra.mxu0 %v822
            %851 = vmatprep.subr.bf16.mxu0 0
            %852 = vmatpush1.bf16.msra.mxu0 %v821
            %853 = vmatprep.subr.bf16.mxu0 0
            %854 = vmatpush2.bf16.msra.mxu0 0
            %855 = vmatprep.subr.bf16.mxu0 0
            %856 = vmatpush2.bf16.msra.mxu0 0
            %857 = vmatprep.subr.bf16.mxu0 0
            %858 = vmatpush2.bf16.msra.mxu0 0
            %859 = vmatprep.subr.bf16.mxu0 0
            %860 = vmatpush2.bf16.msra.mxu0 0
            %861 = vmatprep.subr.bf16.mxu0 0
            %862 = vmatpush2.bf16.msra.mxu0 0
            %863 = vmatprep.subr.bf16.mxu0 0
            %864 = vmatpush2.bf16.msra.mxu0 0
            %865 = vmatprep.subr.bf16.mxu0 0
            %866 = vmatpush2.bf16.msra.mxu0 0
            %867 = vmatprep.subr.bf16.mxu0 0
            %868 = vmatpush2.bf16.msra.mxu0 0
            %869 = vmatprep.mubr.bf16.mxu0 0
            %870 = vmatmul.mubr.bf16.gmra.mxu0 %v764
            %v871 = vpop.f32.mrf.mxu0
            %v872 = vadd.f32 %v787, %v871
            %v873 = vpop.f32.mrf.mxu0
            %v874 = vpop.f32.mrf.mxu0
            %v875 = vadd.f32 %v787, %v874
            %v876 = vpop.f32.mrf.mxu0
            %877 = vmatprep.mubr.bf16.mxu0 0
            %878 = vmatmul.mubr.bf16.gmra.mxu0 %v765
            %v879 = vpop.f32.mrf.mxu0
            %v880 = vadd.f32 %v787, %v879
            %v881 = vpop.f32.mrf.mxu0
            %v882 = vpop.f32.mrf.mxu0
            %v883 = vadd.f32 %v787, %v882
            %v884 = vpop.f32.mrf.mxu0
            %885 = vdwg.mxu0
            %v886 = vmax.f32 %v872, 0.0
            %v887 = vmax.f32 %v875, 0.0
            %v888 = vmax.f32 %v880, 0.0
            %v889 = vmax.f32 %v883, 0.0
            %v890 = vpack.c.bf16 %v887, %v886
            %v891 = vpack.c.bf16 %v889, %v888
            %v892 = vld [vmem:[#allocation9] sm:$0xf]
            %v893 = vld [vmem:[#allocation9 + $0x4] sm:$0xf]
            %v894 = vld [vmem:[#allocation9 + $0x8] sm:$0xf]
            %v895 = vld [vmem:[#allocation9 + $0xc] sm:$0xf]
            %v896 = vld [vmem:[#allocation9 + $0x10] sm:$0xf]
            %v897 = vld [vmem:[#allocation9 + $0x14] sm:$0xf]
            %v898 = vld [vmem:[#allocation9 + $0x18] sm:$0xf]
            %v899 = vld [vmem:[#allocation9 + $0x1c] sm:$0xf]
            %v900 = vld [vmem:[#allocation9 + $0x20] sm:$0xf]
            %v901 = vld [vmem:[#allocation9 + $0x24] sm:$0xf]
            %v902 = vld [vmem:[#allocation9 + $0x28] sm:$0xf]
            %v903 = vld [vmem:[#allocation9 + $0x2c] sm:$0xf]
            %v904 = vld [vmem:[#allocation9 + $0x30] sm:$0xf]
            %v905 = vld [vmem:[#allocation9 + $0x34] sm:$0xf]
            %v906 = vld [vmem:[#allocation9 + $0x38] sm:$0xf]
            %v907 = vld [vmem:[#allocation9 + $0x3c] sm:$0xf]
            %v908 = vld [vmem:[%s7] sm:$0x1]
            %v910 = vlaneseq
            %v911 = vshrl.u32 %v910, 7
            %v912 = vsub.s32 0, %v911
            %v913 = vrot.slane %v908, %v912
            %v931 = vunpack.c.l.b16 %v892
            %v932 = vunpack.c.l.b16 %v893
            %v933 = vunpack.c.l.b16 %v894
            %v934 = vunpack.c.l.b16 %v895
            %v935 = vunpack.c.l.b16 %v896
            %v936 = vunpack.c.l.b16 %v897
            %v937 = vunpack.c.l.b16 %v898
            %v938 = vunpack.c.l.b16 %v899
            %v939 = vunpack.c.l.b16 %v900
            %v940 = vunpack.c.l.b16 %v901
            %v941 = vunpack.c.l.b16 %v902
            %v942 = vunpack.c.l.b16 %v903
            %v943 = vunpack.c.l.b16 %v904
            %v944 = vunpack.c.l.b16 %v905
            %v945 = vunpack.c.l.b16 %v906
            %v946 = vunpack.c.l.b16 %v907
            %v947 = vpack.c.b16 %v932, %v931
            %v948 = vpack.c.b16 %v934, %v933
            %v949 = vpack.c.b16 %v936, %v935
            %v950 = vpack.c.b16 %v938, %v937
            %v951 = vpack.c.b16 %v940, %v939
            %v952 = vpack.c.b16 %v942, %v941
            %v953 = vpack.c.b16 %v944, %v943
            %v954 = vpack.c.b16 %v946, %v945
            %963 = vmatprep.subr.bf16.mxu0 0
            %964 = vmatpush1.bf16.msra.mxu0 %v954
            %965 = vmatprep.subr.bf16.mxu0 0
            %966 = vmatpush1.bf16.msra.mxu0 %v953
            %967 = vmatprep.subr.bf16.mxu0 0
            %968 = vmatpush1.bf16.msra.mxu0 %v952
            %969 = vmatprep.subr.bf16.mxu0 0
            %970 = vmatpush1.bf16.msra.mxu0 %v951
            %971 = vmatprep.subr.bf16.mxu0 0
            %972 = vmatpush1.bf16.msra.mxu0 %v950
            %973 = vmatprep.subr.bf16.mxu0 0
            %974 = vmatpush1.bf16.msra.mxu0 %v949
            %975 = vmatprep.subr.bf16.mxu0 0
            %976 = vmatpush1.bf16.msra.mxu0 %v948
            %977 = vmatprep.subr.bf16.mxu0 0
            %978 = vmatpush1.bf16.msra.mxu0 %v947
            %979 = vmatprep.subr.bf16.mxu0 0
            %980 = vmatpush2.bf16.msra.mxu0 0
            %981 = vmatprep.subr.bf16.mxu0 0
            %982 = vmatpush2.bf16.msra.mxu0 0
            %983 = vmatprep.subr.bf16.mxu0 0
            %984 = vmatpush2.bf16.msra.mxu0 0
            %985 = vmatprep.subr.bf16.mxu0 0
            %986 = vmatpush2.bf16.msra.mxu0 0
            %987 = vmatprep.subr.bf16.mxu0 0
            %988 = vmatpush2.bf16.msra.mxu0 0
            %989 = vmatprep.subr.bf16.mxu0 0
            %990 = vmatpush2.bf16.msra.mxu0 0
            %991 = vmatprep.subr.bf16.mxu0 0
            %992 = vmatpush2.bf16.msra.mxu0 0
            %993 = vmatprep.subr.bf16.mxu0 0
            %994 = vmatpush2.bf16.msra.mxu0 0
            %995 = vmatprep.mubr.bf16.mxu0 0
            %996 = vmatmul.mubr.bf16.gmra.mxu0 %v890
            %v997 = vpop.f32.mrf.mxu0
            %v998 = vadd.f32 %v913, %v997
            %v999 = vpop.f32.mrf.mxu0
            %v1000 = vpop.f32.mrf.mxu0
            %v1001 = vadd.f32 %v913, %v1000
            %v1002 = vpop.f32.mrf.mxu0
            %1003 = vmatprep.mubr.bf16.mxu0 0
            %1004 = vmatmul.mubr.bf16.gmra.mxu0 %v891
            %v1005 = vpop.f32.mrf.mxu0
            %v1006 = vadd.f32 %v913, %v1005
            %v1007 = vpop.f32.mrf.mxu0
            %v1008 = vpop.f32.mrf.mxu0
            %v1009 = vadd.f32 %v913, %v1008
            %v1010 = vpop.f32.mrf.mxu0
            %1011 = vdwg.mxu0
            %v1012 = vmax.f32 %v998, 0.0
            %v1013 = vmax.f32 %v1001, 0.0
            %v1014 = vmax.f32 %v1006, 0.0
            %v1015 = vmax.f32 %v1009, 0.0
            %v1016 = vpack.c.bf16 %v1013, %v1012
            %v1017 = vpack.c.bf16 %v1015, %v1014
            %v1018 = vld [vmem:[#allocation10] sm:$0xf]
            %v1019 = vld [vmem:[#allocation10 + $0x4] sm:$0xf]
            %v1020 = vld [vmem:[#allocation10 + $0x8] sm:$0xf]
            %v1021 = vld [vmem:[#allocation10 + $0xc] sm:$0xf]
            %v1022 = vld [vmem:[#allocation10 + $0x10] sm:$0xf]
            %v1023 = vld [vmem:[#allocation10 + $0x14] sm:$0xf]
            %v1024 = vld [vmem:[#allocation10 + $0x18] sm:$0xf]
            %v1025 = vld [vmem:[#allocation10 + $0x1c] sm:$0xf]
            %v1026 = vld [vmem:[#allocation10 + $0x20] sm:$0xf]
            %v1027 = vld [vmem:[#allocation10 + $0x24] sm:$0xf]
            %v1028 = vld [vmem:[#allocation10 + $0x28] sm:$0xf]
            %v1029 = vld [vmem:[#allocation10 + $0x2c] sm:$0xf]
            %v1030 = vld [vmem:[#allocation10 + $0x30] sm:$0xf]
            %v1031 = vld [vmem:[#allocation10 + $0x34] sm:$0xf]
            %v1032 = vld [vmem:[#allocation10 + $0x38] sm:$0xf]
            %v1033 = vld [vmem:[#allocation10 + $0x3c] sm:$0xf]
            %v1034 = vld [vmem:[%s9] sm:$0x1]
            %v1036 = vlaneseq
            %v1037 = vshrl.u32 %v1036, 7
            %v1038 = vsub.s32 0, %v1037
            %v1039 = vrot.slane %v1034, %v1038
            %v1057 = vunpack.c.l.b16 %v1018
            %v1058 = vunpack.c.l.b16 %v1019
            %v1059 = vunpack.c.l.b16 %v1020
            %v1060 = vunpack.c.l.b16 %v1021
            %v1061 = vunpack.c.l.b16 %v1022
            %v1062 = vunpack.c.l.b16 %v1023
            %v1063 = vunpack.c.l.b16 %v1024
            %v1064 = vunpack.c.l.b16 %v1025
            %v1065 = vunpack.c.l.b16 %v1026
            %v1066 = vunpack.c.l.b16 %v1027
            %v1067 = vunpack.c.l.b16 %v1028
            %v1068 = vunpack.c.l.b16 %v1029
            %v1069 = vunpack.c.l.b16 %v1030
            %v1070 = vunpack.c.l.b16 %v1031
            %v1071 = vunpack.c.l.b16 %v1032
            %v1072 = vunpack.c.l.b16 %v1033
            %v1073 = vpack.c.b16 %v1058, %v1057
            %v1074 = vpack.c.b16 %v1060, %v1059
            %v1075 = vpack.c.b16 %v1062, %v1061
            %v1076 = vpack.c.b16 %v1064, %v1063
            %v1077 = vpack.c.b16 %v1066, %v1065
            %v1078 = vpack.c.b16 %v1068, %v1067
            %v1079 = vpack.c.b16 %v1070, %v1069
            %v1080 = vpack.c.b16 %v1072, %v1071
            %1089 = vmatprep.subr.bf16.mxu0 0
            %1090 = vmatpush1.bf16.msra.mxu0 %v1080
            %1091 = vmatprep.subr.bf16.mxu0 0
            %1092 = vmatpush1.bf16.msra.mxu0 %v1079
            %1093 = vmatprep.subr.bf16.mxu0 0
            %1094 = vmatpush1.bf16.msra.mxu0 %v1078
            %1095 = vmatprep.subr.bf16.mxu0 0
            %1096 = vmatpush1.bf16.msra.mxu0 %v1077
            %1097 = vmatprep.subr.bf16.mxu0 0
            %1098 = vmatpush1.bf16.msra.mxu0 %v1076
            %1099 = vmatprep.subr.bf16.mxu0 0
            %1100 = vmatpush1.bf16.msra.mxu0 %v1075
            %1101 = vmatprep.subr.bf16.mxu0 0
            %1102 = vmatpush1.bf16.msra.mxu0 %v1074
            %1103 = vmatprep.subr.bf16.mxu0 0
            %1104 = vmatpush1.bf16.msra.mxu0 %v1073
            %1105 = vmatprep.subr.bf16.mxu0 0
            %1106 = vmatpush2.bf16.msra.mxu0 0
            %1107 = vmatprep.subr.bf16.mxu0 0
            %1108 = vmatpush2.bf16.msra.mxu0 0
            %1109 = vmatprep.subr.bf16.mxu0 0
            %1110 = vmatpush2.bf16.msra.mxu0 0
            %1111 = vmatprep.subr.bf16.mxu0 0
            %1112 = vmatpush2.bf16.msra.mxu0 0
            %1113 = vmatprep.subr.bf16.mxu0 0
            %1114 = vmatpush2.bf16.msra.mxu0 0
            %1115 = vmatprep.subr.bf16.mxu0 0
            %1116 = vmatpush2.bf16.msra.mxu0 0
            %1117 = vmatprep.subr.bf16.mxu0 0
            %1118 = vmatpush2.bf16.msra.mxu0 0
            %1119 = vmatprep.subr.bf16.mxu0 0
            %1120 = vmatpush2.bf16.msra.mxu0 0
            %1121 = vmatprep.mubr.bf16.mxu0 0
            %1122 = vmatmul.mubr.bf16.gmra.mxu0 %v1016
            %v1123 = vpop.f32.mrf.mxu0
            %v1124 = vadd.f32 %v1039, %v1123
            %v1125 = vpop.f32.mrf.mxu0
            %v1126 = vpop.f32.mrf.mxu0
            %v1127 = vadd.f32 %v1039, %v1126
            %v1128 = vpop.f32.mrf.mxu0
            %1129 = vmatprep.mubr.bf16.mxu0 0
            %1130 = vmatmul.mubr.bf16.gmra.mxu0 %v1017
            %v1131 = vpop.f32.mrf.mxu0
            %v1132 = vadd.f32 %v1039, %v1131
            %v1133 = vpop.f32.mrf.mxu0
            %v1134 = vpop.f32.mrf.mxu0
            %v1135 = vadd.f32 %v1039, %v1134
            %v1136 = vpop.f32.mrf.mxu0
            %1137 = vdwg.mxu0
            %1138 = vmax.xlane.f32.xlu0 %v1124
            %v1139 = vpop.xlane.xlu0 %1138
            %1140 = vmax.xlane.f32.xlu0 %v1127
            %v1141 = vpop.xlane.xlu0 %1140
            %1142 = vmax.xlane.f32.xlu0 %v1132
            %v1143 = vpop.xlane.xlu0 %1142
            %1144 = vmax.xlane.f32.xlu0 %v1135
            %v1145 = vpop.xlane.xlu0 %1144
            %v1146 = vsub.f32 %v1124, %v1139
            %v1147 = vsub.f32 %v1127, %v1141
            %v1148 = vsub.f32 %v1132, %v1143
            %v1149 = vsub.f32 %v1135, %v1145
            %v1150 = vmul.f32 %v1146, 1.442695
            %v1151 = vpow.pop %v1150
            %v1152 = vmul.f32 %v1147, 1.442695
            %v1153 = vpow.pop %v1152
            %v1154 = vmul.f32 %v1148, 1.442695
            %v1155 = vpow.pop %v1154
            %v1156 = vmul.f32 %v1149, 1.442695
            %v1157 = vpow.pop %v1156
            %1158 = vadd.xlane.f32.xlu0 %v1151
            %v1159 = vpop.xlane.xlu0 %1158
            %1160 = vadd.xlane.f32.xlu0 %v1153
            %v1161 = vpop.xlane.xlu0 %1160
            %1162 = vadd.xlane.f32.xlu0 %v1155
            %v1163 = vpop.xlane.xlu0 %1162
            %1164 = vadd.xlane.f32.xlu0 %v1157
            %v1165 = vpop.xlane.xlu0 %1164
            %v1166 = vlog2.pop %v1159
            %v1167 = vmul.f32 %v1166, 0.6931472
            %v1168 = vlog2.pop %v1161
            %v1169 = vmul.f32 %v1168, 0.6931472
            %v1170 = vlog2.pop %v1163
            %v1171 = vmul.f32 %v1170, 0.6931472
            %v1172 = vlog2.pop %v1165
            %v1173 = vmul.f32 %v1172, 0.6931472
            %v1174 = vsub.f32 %v1146, %v1167
            %v1175 = vsub.f32 %v1147, %v1169
            %v1176 = vsub.f32 %v1148, %v1171
            %v1177 = vsub.f32 %v1149, %v1173
            %1178 = vst [vmem:[%s505] sm:$0xff] %v1174
            %1179 = vst [vmem:[%s505 + $0x8] sm:$0xff] %v1175
            %1180 = vst [vmem:[%s505 + $0x10] sm:$0xff] %v1176
            %1181 = vst [vmem:[%s505 + $0x18] sm:$0xff] %v1177
          $region88: #{tpu_custom_call.1} parent=79 // pred_fallthru
            _
        $region80: #{tpu_custom_call.1} parent=59 // pred_fallthru
          _
        %p1182 = scmp.gt.s32.totalorder %s33, 0
        // Predicated region
        $region89: #{tpu_custom_call.1} parent=59 // pred_check
          %p1183 = pneg %p1182
        $region90: #{tpu_custom_call.1} parent=59 // pred_check_branch
          %1185 = sbr.rel (%p1183) target = $region92
        $region91: #{tpu_custom_call.1} parent=59 // pred_region
          %s1186 = ssub.s32 %s33, 1
          %p1187 = scmp.lt.s32.totalorder %s1186, 0
          %s1188 = ssub.s32 0, %s1186
          %s1189 = scalar_select %p1187, %s1188, %s1186
          %s1190 = sand.u32 %s1189, 1
          %s1191 = ssub.s32 0, %s1190
          %s1192 = scalar_select %p1187, %s1191, %s1190
          %p1193 = scmp.ne.s32.totalorder %s1192, 0
          %p1194 = scmp.lt.s32.totalorder %s1192, 0
          %p1195 = pnand %p1194, %p1193
          %p1196 = pneg %p1195
          %s1197 = sadd.s32 %s1192, 2
          %s1198 = scalar_select %p1196, %s1197, %s1192
          %s1199 = smul.u32 %s1198, 64
          %s1200 = sshra.s32 %s1199, 3
          %s1201 = sand.u32 %s1199, 7
          %s1202 = smul.addr %s1200, 4
          %s1203 = scalar_lea.vmem [#allocation2], %s1202
          %v1204 = vld [vmem:[%s1203] sm:$0xf]
          %v1205 = vld [vmem:[%s1203 + $0x4] sm:$0xf]
          %v1206 = vld [vmem:[%s1203 + $0x8] sm:$0xf]
          %v1207 = vld [vmem:[%s1203 + $0xc] sm:$0xf]
          %v1208 = vld [vmem:[%s1203 + $0x10] sm:$0xf]
          %v1209 = vld [vmem:[%s1203 + $0x14] sm:$0xf]
          %v1210 = vld [vmem:[%s1203 + $0x18] sm:$0xf]
          %v1211 = vld [vmem:[%s1203 + $0x1c] sm:$0xf]
          %v1212 = vld [vmem:[%s441] sm:$0xf]
          %v1213 = vld [vmem:[%s441 + $0x4] sm:$0xf]
          %v1214 = vld [vmem:[%s441 + $0x8] sm:$0xf]
          %v1215 = vld [vmem:[%s441 + $0xc] sm:$0xf]
          %v1220 = vunpack.c.l.b16 %v1212
          %v1221 = vunpack.c.l.b16 %v1213
          %v1222 = vunpack.c.l.b16 %v1214
          %v1223 = vunpack.c.l.b16 %v1215
          %v1224 = vpack.c.b16 %v1221, %v1220
          %v1225 = vpack.c.b16 %v1223, %v1222
          %v1234 = vunpack.c.l.b16 %v1204
          %v1235 = vunpack.c.l.b16 %v1205
          %v1236 = vunpack.c.l.b16 %v1206
          %v1237 = vunpack.c.l.b16 %v1207
          %v1238 = vunpack.c.l.b16 %v1208
          %v1239 = vunpack.c.l.b16 %v1209
          %v1240 = vunpack.c.l.b16 %v1210
          %v1241 = vunpack.c.l.b16 %v1211
          %v1242 = vpack.c.b16 %v1235, %v1234
          %v1243 = vpack.c.b16 %v1237, %v1236
          %v1244 = vpack.c.b16 %v1239, %v1238
          %v1245 = vpack.c.b16 %v1241, %v1240
          %vm1250 = vcmask 523264
          %v1252 = vsel %vm1250, %v1224, 0
          %v1255 = vsel %vm1250, %v1225, 0
          %1257 = vmatprep.subr.bf16.mxu0 0
          %1258 = vmatpush1.bf16.msra.mxu0 0
          %1259 = vmatprep.subr.bf16.mxu0 0
          %1260 = vmatpush1.bf16.msra.mxu0 0
          %1261 = vmatprep.subr.bf16.mxu0 0
          %1262 = vmatpush1.bf16.msra.mxu0 0
          %1263 = vmatprep.subr.bf16.mxu0 0
          %1264 = vmatpush1.bf16.msra.mxu0 0
          %1265 = vmatprep.subr.bf16.mxu0 0
          %1266 = vmatpush1.bf16.msra.mxu0 %v1245
          %1267 = vmatprep.subr.bf16.mxu0 0
          %1268 = vmatpush1.bf16.msra.mxu0 %v1244
          %1269 = vmatprep.subr.bf16.mxu0 0
          %1270 = vmatpush1.bf16.msra.mxu0 %v1243
          %1271 = vmatprep.subr.bf16.mxu0 0
          %1272 = vmatpush1.bf16.msra.mxu0 %v1242
          %1273 = vmatprep.subr.bf16.mxu0 0
          %1274 = vmatpush2.bf16.msra.mxu0 0
          %1275 = vmatprep.subr.bf16.mxu0 0
          %1276 = vmatpush2.bf16.msra.mxu0 0
          %1277 = vmatprep.subr.bf16.mxu0 0
          %1278 = vmatpush2.bf16.msra.mxu0 0
          %1279 = vmatprep.subr.bf16.mxu0 0
          %1280 = vmatpush2.bf16.msra.mxu0 0
          %1281 = vmatprep.subr.bf16.mxu0 0
          %1282 = vmatpush2.bf16.msra.mxu0 0
          %1283 = vmatprep.subr.bf16.mxu0 0
          %1284 = vmatpush2.bf16.msra.mxu0 0
          %1285 = vmatprep.subr.bf16.mxu0 0
          %1286 = vmatpush2.bf16.msra.mxu0 0
          %1287 = vmatprep.subr.bf16.mxu0 0
          %1288 = vmatpush2.bf16.msra.mxu0 0
          %1289 = vmatprep.mubr.bf16.mxu0 0
          %1290 = vmatmul.mubr.bf16.gmra.mxu0 %v1252
          %v1291 = vpop.f32.mrf.mxu0
          %v1292 = vadd.f32 0.0, %v1291
          %v1293 = vpop.f32.mrf.mxu0
          %v1294 = vpop.f32.mrf.mxu0
          %v1295 = vadd.f32 0.0, %v1294
          %v1296 = vpop.f32.mrf.mxu0
          %1297 = vmatprep.mubr.bf16.mxu0 0
          %1298 = vmatmul.mubr.bf16.gmra.mxu0 %v1255
          %v1299 = vpop.f32.mrf.mxu0
          %v1300 = vadd.f32 0.0, %v1299
          %v1301 = vpop.f32.mrf.mxu0
          %v1302 = vpop.f32.mrf.mxu0
          %v1303 = vadd.f32 0.0, %v1302
          %v1304 = vpop.f32.mrf.mxu0
          %1305 = vdwg.mxu0
          %v1306 = vld [vmem:[%s515] sm:$0xff]
          %v1307 = vld [vmem:[%s515 + $0x8] sm:$0xff]
          %v1308 = vld [vmem:[%s515 + $0x10] sm:$0xff]
          %v1309 = vld [vmem:[%s515 + $0x18] sm:$0xff]
          %1311 = vset.pattern.permute.xlu0 0
          %1312 = vperm.xlu0 %1311, %v1306
          %v1313 = vpop.permute.xlu0 %1312
          %1316 = vset.pattern.permute.xlu0 0
          %1317 = vperm.xlu0 %1316, %v1307
          %v1318 = vpop.permute.xlu0 %1317
          %1321 = vset.pattern.permute.xlu0 0
          %1322 = vperm.xlu0 %1321, %v1308
          %v1323 = vpop.permute.xlu0 %1322
          %1326 = vset.pattern.permute.xlu0 0
          %1327 = vperm.xlu0 %1326, %v1309
          %v1328 = vpop.permute.xlu0 %1327
          %v1330 = vmul.f32 %v1313, %v1292
          %v1331 = vmul.f32 %v1318, %v1295
          %v1332 = vmul.f32 %v1323, %v1300
          %v1333 = vmul.f32 %v1328, %v1303
          %p1334 = scmp.lt.s32.totalorder %s33, 2
          // Predicated region
          $region93: #{tpu_custom_call.1} parent=91 // pred_check
            %p1335 = pneg %p1334
          $region94: #{tpu_custom_call.1} parent=91 // pred_check_branch
            %1337 = sbr.rel (%p1335) target = $region96
          $region95: #{tpu_custom_call.1} parent=91 // pred_region
            %p1338 = scmp.lt.s32.totalorder %s33, 0
            %s1339 = ssub.s32 0, %s33
            %s1340 = scalar_select %p1338, %s1339, %s33
            %s1341 = sand.u32 %s1340, 1
            %s1342 = ssub.s32 0, %s1341
            %s1343 = scalar_select %p1338, %s1342, %s1341
            %p1344 = scmp.ne.s32.totalorder %s1343, 0
            %p1345 = scmp.lt.s32.totalorder %s1343, 0
            %p1346 = pnand %p1345, %p1344
            %p1347 = pneg %p1346
            %s1348 = sadd.s32 %s1343, 2
            %s1349 = scalar_select %p1347, %s1348, %s1343
            %s1350 = smul.u32 %s1349, 64
            %s1351 = sadd.s32 %s1350, %s537
            %v1352 = vpack.c.bf16 %v1331, %v1330
            %v1353 = vpack.c.bf16 %v1333, %v1332
            %v1356 = vunpack.c.l.b16 %v1352
            %v1357 = vunpack.c.h.b16 %v1352
            %v1358 = vunpack.c.l.b16 %v1353
            %v1359 = vunpack.c.h.b16 %v1353
            %v1360 = vpack.c.b16 %v1356, %v1356
            %v1361 = vpack.c.b16 %v1357, %v1357
            %v1362 = vpack.c.b16 %v1358, %v1358
            %v1363 = vpack.c.b16 %v1359, %v1359
            %s1368 = sshra.s32 %s1351, 3
            %s1369 = sand.u32 %s1351, 7
            %s1370 = smul.addr %s1368, 4
            %s1371 = scalar_lea.vmem [#allocation2], %s1370
            %1372 = vst [vmem:[%s1371] sm:$0xf] %v1360
            %1373 = vst [vmem:[%s1371 + $0x4] sm:$0xf] %v1361
            %1374 = vst [vmem:[%s1371 + $0x8] sm:$0xf] %v1362
            %1375 = vst [vmem:[%s1371 + $0xc] sm:$0xf] %v1363
          $region96: #{tpu_custom_call.1} parent=91 // pred_fallthru
            _
          // Predicated region
          $region97: #{tpu_custom_call.1} parent=91 // pred_check
            %p1376 = pneg %p544
          $region98: #{tpu_custom_call.1} parent=91 // pred_check_branch
            %1378 = sbr.rel (%p1376) target = $region100
          $region99: #{tpu_custom_call.1} parent=91 // pred_region
            %s1379 = scalar_lea.vmem [#allocation3], %s537
            %1380 = vst [vmem:[%s1379] sm:$0xff] 0.0
            %1381 = vst [vmem:[%s1379 + $0x8] sm:$0xff] 0.0
            %1382 = vst [vmem:[%s1379 + $0x10] sm:$0xff] 0.0
            %1383 = vst [vmem:[%s1379 + $0x18] sm:$0xff] 0.0
          $region100: #{tpu_custom_call.1} parent=91 // pred_fallthru
            _
          %s1384 = scalar_lea.vmem [#allocation3], %s537
          %v1385 = vld [vmem:[%s1384] sm:$0xff]
          %v1386 = vld [vmem:[%s1384 + $0x8] sm:$0xff]
          %v1387 = vld [vmem:[%s1384 + $0x10] sm:$0xff]
          %v1388 = vld [vmem:[%s1384 + $0x18] sm:$0xff]
          %s1389 = ssub.f32 %s538, 0.5
          %v1390 = vstv %s1389
          %vm1391 = vcmp.gt.f32.partialorder %v1385, %v1390
          %vm1392 = vcmp.gt.f32.partialorder %v1386, %v1390
          %vm1393 = vcmp.gt.f32.partialorder %v1387, %v1390
          %vm1394 = vcmp.gt.f32.partialorder %v1388, %v1390
          %v1395 = vld [vmem:[%s3] sm:$0x1]
          %v1397 = vlaneseq
          %v1398 = vshrl.u32 %v1397, 7
          %v1399 = vsub.s32 0, %v1398
          %v1400 = vrot.slane %v1395, %v1399
          %v1402 = vsub.f32 %v1330, %v1400
          %v1403 = vsub.f32 %v1331, %v1400
          %v1404 = vsub.f32 %v1332, %v1400
          %v1405 = vsub.f32 %v1333, %v1400
          %v1406 = vmul.f32 %v1402, %v1402
          %v1407 = vmul.f32 %v1403, %v1403
          %v1408 = vmul.f32 %v1404, %v1404
          %v1409 = vmul.f32 %v1405, %v1405
          %1410 = vadd.xlane.f32.xlu0 %v1406
          %v1411 = vpop.xlane.xlu0 %1410
          %1412 = vadd.xlane.f32.xlu0 %v1407
          %v1413 = vpop.xlane.xlu0 %1412
          %1414 = vadd.xlane.f32.xlu0 %v1408
          %v1415 = vpop.xlane.xlu0 %1414
          %1416 = vadd.xlane.f32.xlu0 %v1409
          %v1417 = vpop.xlane.xlu0 %1416
          %vm1418 = vcmp.lt.f32.partialorder %v1411, 0.0025
          %vm1419 = vcmp.lt.f32.partialorder %v1413, 0.0025
          %vm1420 = vcmp.lt.f32.partialorder %v1415, 0.0025
          %vm1421 = vcmp.lt.f32.partialorder %v1417, 0.0025
          %vm1422 = vmand %vm1418, %vm1391
          %vm1423 = vmand %vm1419, %vm1392
          %vm1424 = vmand %vm1420, %vm1393
          %vm1425 = vmand %vm1421, %vm1394
          %vm1426 = vmxor %vm1422, 1
          %vm1427 = vmxor %vm1423, 1
          %vm1428 = vmxor %vm1424, 1
          %vm1429 = vmxor %vm1425, 1
          %vm1430 = vmand %vm1391, %vm1426
          %vm1431 = vmand %vm1392, %vm1427
          %vm1432 = vmand %vm1393, %vm1428
          %vm1433 = vmand %vm1394, %vm1429
          %v1434 = vadd.f32 %v1330, %v543
          %v1435 = vadd.f32 %v1331, %v543
          %v1436 = vadd.f32 %v1332, %v543
          %v1437 = vadd.f32 %v1333, %v543
          %v1438 = vsel %vm1430, 1, 0
          %v1439 = vsel %vm1431, 1, 0
          %v1440 = vsel %vm1432, 1, 0
          %v1441 = vsel %vm1433, 1, 0
          %1442 = vset.pattern.permute.xlu0 127
          %1443 = vperm.xlu0 %1442, %v1438
          %v1444 = vpop.permute.xlu0 %1443
          %1445 = vset.pattern.permute.xlu0 127
          %1446 = vperm.xlu0 %1445, %v1439
          %v1447 = vpop.permute.xlu0 %1446
          %1448 = vset.pattern.permute.xlu0 127
          %1449 = vperm.xlu0 %1448, %v1440
          %v1450 = vpop.permute.xlu0 %1449
          %1451 = vset.pattern.permute.xlu0 127
          %1452 = vperm.xlu0 %1451, %v1441
          %v1453 = vpop.permute.xlu0 %1452
          %vm1454 = vcmp.eq.s32.totalorder %v1444, 1
          %vm1455 = vcmp.eq.s32.totalorder %v1447, 1
          %vm1456 = vcmp.eq.s32.totalorder %v1450, 1
          %vm1457 = vcmp.eq.s32.totalorder %v1453, 1
          %v1458 = vsel %vm1454, %v1434, 0.0
          %v1459 = vsel %vm1455, %v1435, 0.0
          %v1460 = vsel %vm1456, %v1436, 0.0
          %v1461 = vsel %vm1457, %v1437, 0.0
          %v1462 = vadd.f32 %v1385, %v1458
          %v1463 = vadd.f32 %v1386, %v1459
          %v1464 = vadd.f32 %v1387, %v1460
          %v1465 = vadd.f32 %v1388, %v1461
          %1466 = vst [vmem:[%s1384] sm:$0xff] %v1462
          %1467 = vst [vmem:[%s1384 + $0x8] sm:$0xff] %v1463
          %1468 = vst [vmem:[%s1384 + $0x10] sm:$0xff] %v1464
          %1469 = vst [vmem:[%s1384 + $0x18] sm:$0xff] %v1465
          %p1470 = scmp.eq.s32.totalorder %s33, 2
          // Predicated region
          $region101: #{tpu_custom_call.1} parent=91 // pred_check
            %p1471 = pneg %p1470
          $region102: #{tpu_custom_call.1} parent=91 // pred_check_branch
            %1473 = sbr.rel (%p1471) target = $region104
          $region103: #{tpu_custom_call.1} parent=91 // pred_region
            %v1474 = vld [vmem:[%s527] sm:$0xff]
            %v1475 = vld [vmem:[%s527 + $0x8] sm:$0xff]
            %v1476 = vld [vmem:[%s527 + $0x10] sm:$0xff]
            %v1477 = vld [vmem:[%s527 + $0x18] sm:$0xff]
            %v1478 = vmax.f32 %v1462, 1.0
            %v1479 = vmax.f32 %v1463, 1.0
            %v1480 = vmax.f32 %v1464, 1.0
            %v1481 = vmax.f32 %v1465, 1.0
            %v1482 = vmul.f32 %v1462, 0.85
            %v1483 = vmul.f32 %v1463, 0.85
            %v1484 = vmul.f32 %v1464, 0.85
            %v1485 = vmul.f32 %v1465, 0.85
            %1487 = vset.pattern.permute.xlu0 127
            %1488 = vperm.xlu0 %1487, %v1478
            %v1489 = vpop.permute.xlu0 %1488
            %1492 = vset.pattern.permute.xlu0 127
            %1493 = vperm.xlu0 %1492, %v1479
            %v1494 = vpop.permute.xlu0 %1493
            %1497 = vset.pattern.permute.xlu0 127
            %1498 = vperm.xlu0 %1497, %v1480
            %v1499 = vpop.permute.xlu0 %1498
            %1502 = vset.pattern.permute.xlu0 127
            %1503 = vperm.xlu0 %1502, %v1481
            %v1504 = vpop.permute.xlu0 %1503
            %v1506 = vrcp.pop %v1489
            %v1507 = vmul.f32 %v1482, %v1506
            %v1508 = vrcp.pop %v1494
            %v1509 = vmul.f32 %v1483, %v1508
            %v1510 = vrcp.pop %v1499
            %v1511 = vmul.f32 %v1484, %v1510
            %v1512 = vrcp.pop %v1504
            %v1513 = vmul.f32 %v1485, %v1512
            %v1514 = vmul.f32 %v1474, 0.15
            %v1515 = vmul.f32 %v1475, 0.15
            %v1516 = vmul.f32 %v1476, 0.15
            %v1517 = vmul.f32 %v1477, 0.15
            %v1518 = vadd.f32 %v1507, %v1514
            %v1519 = vadd.f32 %v1509, %v1515
            %v1520 = vadd.f32 %v1511, %v1516
            %v1521 = vadd.f32 %v1513, %v1517
            %vm1522 = vcmp.lt.f32.partialorder %v1462, 0.5
            %vm1523 = vcmp.lt.f32.partialorder %v1463, 0.5
            %vm1524 = vcmp.lt.f32.partialorder %v1464, 0.5
            %vm1525 = vcmp.lt.f32.partialorder %v1465, 0.5
            %v1526 = vsel %vm1522, 1, 0
            %v1527 = vsel %vm1523, 1, 0
            %v1528 = vsel %vm1524, 1, 0
            %v1529 = vsel %vm1525, 1, 0
            %1530 = vset.pattern.permute.xlu0 127
            %1531 = vperm.xlu0 %1530, %v1526
            %v1532 = vpop.permute.xlu0 %1531
            %1533 = vset.pattern.permute.xlu0 127
            %1534 = vperm.xlu0 %1533, %v1527
            %v1535 = vpop.permute.xlu0 %1534
            %1536 = vset.pattern.permute.xlu0 127
            %1537 = vperm.xlu0 %1536, %v1528
            %v1538 = vpop.permute.xlu0 %1537
            %1539 = vset.pattern.permute.xlu0 127
            %1540 = vperm.xlu0 %1539, %v1529
            %v1541 = vpop.permute.xlu0 %1540
            %vm1542 = vcmp.eq.s32.totalorder %v1532, 1
            %vm1543 = vcmp.eq.s32.totalorder %v1535, 1
            %vm1544 = vcmp.eq.s32.totalorder %v1538, 1
            %vm1545 = vcmp.eq.s32.totalorder %v1541, 1
            %v1546 = vsel %vm1542, %v1474, %v1518
            %v1547 = vsel %vm1543, %v1475, %v1519
            %v1548 = vsel %vm1544, %v1476, %v1520
            %v1549 = vsel %vm1545, %v1477, %v1521
            %v1550 = vpack.c.bf16 %v1547, %v1546
            %v1551 = vpack.c.bf16 %v1549, %v1548
            %v1552 = vld [vmem:[#allocation7] sm:$0xf]
            %v1553 = vld [vmem:[#allocation7 + $0x4] sm:$0xf]
            %v1554 = vld [vmem:[#allocation7 + $0x8] sm:$0xf]
            %v1555 = vld [vmem:[#allocation7 + $0xc] sm:$0xf]
            %v1556 = vld [vmem:[#allocation7 + $0x10] sm:$0xf]
            %v1557 = vld [vmem:[#allocation7 + $0x14] sm:$0xf]
            %v1558 = vld [vmem:[#allocation7 + $0x18] sm:$0xf]
            %v1559 = vld [vmem:[#allocation7 + $0x1c] sm:$0xf]
            %v1560 = vld [vmem:[#allocation7 + $0x20] sm:$0xf]
            %v1561 = vld [vmem:[#allocation7 + $0x24] sm:$0xf]
            %v1562 = vld [vmem:[#allocation7 + $0x28] sm:$0xf]
            %v1563 = vld [vmem:[#allocation7 + $0x2c] sm:$0xf]
            %v1564 = vld [vmem:[#allocation7 + $0x30] sm:$0xf]
            %v1565 = vld [vmem:[#allocation7 + $0x34] sm:$0xf]
            %v1566 = vld [vmem:[#allocation7 + $0x38] sm:$0xf]
            %v1567 = vld [vmem:[#allocation7 + $0x3c] sm:$0xf]
            %v1568 = vld [vmem:[%s5] sm:$0x1]
            %v1570 = vlaneseq
            %v1571 = vshrl.u32 %v1570, 7
            %v1572 = vsub.s32 0, %v1571
            %v1573 = vrot.slane %v1568, %v1572
            %v1591 = vunpack.c.l.b16 %v1552
            %v1592 = vunpack.c.l.b16 %v1553
            %v1593 = vunpack.c.l.b16 %v1554
            %v1594 = vunpack.c.l.b16 %v1555
            %v1595 = vunpack.c.l.b16 %v1556
            %v1596 = vunpack.c.l.b16 %v1557
            %v1597 = vunpack.c.l.b16 %v1558
            %v1598 = vunpack.c.l.b16 %v1559
            %v1599 = vunpack.c.l.b16 %v1560
            %v1600 = vunpack.c.l.b16 %v1561
            %v1601 = vunpack.c.l.b16 %v1562
            %v1602 = vunpack.c.l.b16 %v1563
            %v1603 = vunpack.c.l.b16 %v1564
            %v1604 = vunpack.c.l.b16 %v1565
            %v1605 = vunpack.c.l.b16 %v1566
            %v1606 = vunpack.c.l.b16 %v1567
            %v1607 = vpack.c.b16 %v1592, %v1591
            %v1608 = vpack.c.b16 %v1594, %v1593
            %v1609 = vpack.c.b16 %v1596, %v1595
            %v1610 = vpack.c.b16 %v1598, %v1597
            %v1611 = vpack.c.b16 %v1600, %v1599
            %v1612 = vpack.c.b16 %v1602, %v1601
            %v1613 = vpack.c.b16 %v1604, %v1603
            %v1614 = vpack.c.b16 %v1606, %v1605
            %1623 = vmatprep.subr.bf16.mxu0 0
            %1624 = vmatpush1.bf16.msra.mxu0 %v1614
            %1625 = vmatprep.subr.bf16.mxu0 0
            %1626 = vmatpush1.bf16.msra.mxu0 %v1613
            %1627 = vmatprep.subr.bf16.mxu0 0
            %1628 = vmatpush1.bf16.msra.mxu0 %v1612
            %1629 = vmatprep.subr.bf16.mxu0 0
            %1630 = vmatpush1.bf16.msra.mxu0 %v1611
            %1631 = vmatprep.subr.bf16.mxu0 0
            %1632 = vmatpush1.bf16.msra.mxu0 %v1610
            %1633 = vmatprep.subr.bf16.mxu0 0
            %1634 = vmatpush1.bf16.msra.mxu0 %v1609
            %1635 = vmatprep.subr.bf16.mxu0 0
            %1636 = vmatpush1.bf16.msra.mxu0 %v1608
            %1637 = vmatprep.subr.bf16.mxu0 0
            %1638 = vmatpush1.bf16.msra.mxu0 %v1607
            %1639 = vmatprep.subr.bf16.mxu0 0
            %1640 = vmatpush2.bf16.msra.mxu0 0
            %1641 = vmatprep.subr.bf16.mxu0 0
            %1642 = vmatpush2.bf16.msra.mxu0 0
            %1643 = vmatprep.subr.bf16.mxu0 0
            %1644 = vmatpush2.bf16.msra.mxu0 0
            %1645 = vmatprep.subr.bf16.mxu0 0
            %1646 = vmatpush2.bf16.msra.mxu0 0
            %1647 = vmatprep.subr.bf16.mxu0 0
            %1648 = vmatpush2.bf16.msra.mxu0 0
            %1649 = vmatprep.subr.bf16.mxu0 0
            %1650 = vmatpush2.bf16.msra.mxu0 0
            %1651 = vmatprep.subr.bf16.mxu0 0
            %1652 = vmatpush2.bf16.msra.mxu0 0
            %1653 = vmatprep.subr.bf16.mxu0 0
            %1654 = vmatpush2.bf16.msra.mxu0 0
            %1655 = vmatprep.mubr.bf16.mxu0 0
            %1656 = vmatmul.mubr.bf16.gmra.mxu0 %v1550
            %v1657 = vpop.f32.mrf.mxu0
            %v1658 = vadd.f32 %v1573, %v1657
            %v1659 = vpop.f32.mrf.mxu0
            %v1660 = vpop.f32.mrf.mxu0
            %v1661 = vadd.f32 %v1573, %v1660
            %v1662 = vpop.f32.mrf.mxu0
            %1663 = vmatprep.mubr.bf16.mxu0 0
            %1664 = vmatmul.mubr.bf16.gmra.mxu0 %v1551
            %v1665 = vpop.f32.mrf.mxu0
            %v1666 = vadd.f32 %v1573, %v1665
            %v1667 = vpop.f32.mrf.mxu0
            %v1668 = vpop.f32.mrf.mxu0
            %v1669 = vadd.f32 %v1573, %v1668
            %v1670 = vpop.f32.mrf.mxu0
            %1671 = vdwg.mxu0
            %v1672 = vmax.f32 %v1658, 0.0
            %v1673 = vmax.f32 %v1661, 0.0
            %v1674 = vmax.f32 %v1666, 0.0
            %v1675 = vmax.f32 %v1669, 0.0
            %v1676 = vpack.c.bf16 %v1673, %v1672
            %v1677 = vpack.c.bf16 %v1675, %v1674
            %v1678 = vld [vmem:[#allocation9] sm:$0xf]
            %v1679 = vld [vmem:[#allocation9 + $0x4] sm:$0xf]
            %v1680 = vld [vmem:[#allocation9 + $0x8] sm:$0xf]
            %v1681 = vld [vmem:[#allocation9 + $0xc] sm:$0xf]
            %v1682 = vld [vmem:[#allocation9 + $0x10] sm:$0xf]
            %v1683 = vld [vmem:[#allocation9 + $0x14] sm:$0xf]
            %v1684 = vld [vmem:[#allocation9 + $0x18] sm:$0xf]
            %v1685 = vld [vmem:[#allocation9 + $0x1c] sm:$0xf]
            %v1686 = vld [vmem:[#allocation9 + $0x20] sm:$0xf]
            %v1687 = vld [vmem:[#allocation9 + $0x24] sm:$0xf]
            %v1688 = vld [vmem:[#allocation9 + $0x28] sm:$0xf]
            %v1689 = vld [vmem:[#allocation9 + $0x2c] sm:$0xf]
            %v1690 = vld [vmem:[#allocation9 + $0x30] sm:$0xf]
            %v1691 = vld [vmem:[#allocation9 + $0x34] sm:$0xf]
            %v1692 = vld [vmem:[#allocation9 + $0x38] sm:$0xf]
            %v1693 = vld [vmem:[#allocation9 + $0x3c] sm:$0xf]
            %v1694 = vld [vmem:[%s7] sm:$0x1]
            %v1696 = vlaneseq
            %v1697 = vshrl.u32 %v1696, 7
            %v1698 = vsub.s32 0, %v1697
            %v1699 = vrot.slane %v1694, %v1698
            %v1717 = vunpack.c.l.b16 %v1678
            %v1718 = vunpack.c.l.b16 %v1679
            %v1719 = vunpack.c.l.b16 %v1680
            %v1720 = vunpack.c.l.b16 %v1681
            %v1721 = vunpack.c.l.b16 %v1682
            %v1722 = vunpack.c.l.b16 %v1683
            %v1723 = vunpack.c.l.b16 %v1684
            %v1724 = vunpack.c.l.b16 %v1685
            %v1725 = vunpack.c.l.b16 %v1686
            %v1726 = vunpack.c.l.b16 %v1687
            %v1727 = vunpack.c.l.b16 %v1688
            %v1728 = vunpack.c.l.b16 %v1689
            %v1729 = vunpack.c.l.b16 %v1690
            %v1730 = vunpack.c.l.b16 %v1691
            %v1731 = vunpack.c.l.b16 %v1692
            %v1732 = vunpack.c.l.b16 %v1693
            %v1733 = vpack.c.b16 %v1718, %v1717
            %v1734 = vpack.c.b16 %v1720, %v1719
            %v1735 = vpack.c.b16 %v1722, %v1721
            %v1736 = vpack.c.b16 %v1724, %v1723
            %v1737 = vpack.c.b16 %v1726, %v1725
            %v1738 = vpack.c.b16 %v1728, %v1727
            %v1739 = vpack.c.b16 %v1730, %v1729
            %v1740 = vpack.c.b16 %v1732, %v1731
            %1749 = vmatprep.subr.bf16.mxu0 0
            %1750 = vmatpush1.bf16.msra.mxu0 %v1740
            %1751 = vmatprep.subr.bf16.mxu0 0
            %1752 = vmatpush1.bf16.msra.mxu0 %v1739
            %1753 = vmatprep.subr.bf16.mxu0 0
            %1754 = vmatpush1.bf16.msra.mxu0 %v1738
            %1755 = vmatprep.subr.bf16.mxu0 0
            %1756 = vmatpush1.bf16.msra.mxu0 %v1737
            %1757 = vmatprep.subr.bf16.mxu0 0
            %1758 = vmatpush1.bf16.msra.mxu0 %v1736
            %1759 = vmatprep.subr.bf16.mxu0 0
            %1760 = vmatpush1.bf16.msra.mxu0 %v1735
            %1761 = vmatprep.subr.bf16.mxu0 0
            %1762 = vmatpush1.bf16.msra.mxu0 %v1734
            %1763 = vmatprep.subr.bf16.mxu0 0
            %1764 = vmatpush1.bf16.msra.mxu0 %v1733
            %1765 = vmatprep.subr.bf16.mxu0 0
            %1766 = vmatpush2.bf16.msra.mxu0 0
            %1767 = vmatprep.subr.bf16.mxu0 0
            %1768 = vmatpush2.bf16.msra.mxu0 0
            %1769 = vmatprep.subr.bf16.mxu0 0
            %1770 = vmatpush2.bf16.msra.mxu0 0
            %1771 = vmatprep.subr.bf16.mxu0 0
            %1772 = vmatpush2.bf16.msra.mxu0 0
            %1773 = vmatprep.subr.bf16.mxu0 0
            %1774 = vmatpush2.bf16.msra.mxu0 0
            %1775 = vmatprep.subr.bf16.mxu0 0
            %1776 = vmatpush2.bf16.msra.mxu0 0
            %1777 = vmatprep.subr.bf16.mxu0 0
            %1778 = vmatpush2.bf16.msra.mxu0 0
            %1779 = vmatprep.subr.bf16.mxu0 0
            %1780 = vmatpush2.bf16.msra.mxu0 0
            %1781 = vmatprep.mubr.bf16.mxu0 0
            %1782 = vmatmul.mubr.bf16.gmra.mxu0 %v1676
            %v1783 = vpop.f32.mrf.mxu0
            %v1784 = vadd.f32 %v1699, %v1783
            %v1785 = vpop.f32.mrf.mxu0
            %v1786 = vpop.f32.mrf.mxu0
            %v1787 = vadd.f32 %v1699, %v1786
            %v1788 = vpop.f32.mrf.mxu0
            %1789 = vmatprep.mubr.bf16.mxu0 0
            %1790 = vmatmul.mubr.bf16.gmra.mxu0 %v1677
            %v1791 = vpop.f32.mrf.mxu0
            %v1792 = vadd.f32 %v1699, %v1791
            %v1793 = vpop.f32.mrf.mxu0
            %v1794 = vpop.f32.mrf.mxu0
            %v1795 = vadd.f32 %v1699, %v1794
            %v1796 = vpop.f32.mrf.mxu0
            %1797 = vdwg.mxu0
            %v1798 = vmax.f32 %v1784, 0.0
            %v1799 = vmax.f32 %v1787, 0.0
            %v1800 = vmax.f32 %v1792, 0.0
            %v1801 = vmax.f32 %v1795, 0.0
            %v1802 = vpack.c.bf16 %v1799, %v1798
            %v1803 = vpack.c.bf16 %v1801, %v1800
            %v1804 = vld [vmem:[#allocation10] sm:$0xf]
            %v1805 = vld [vmem:[#allocation10 + $0x4] sm:$0xf]
            %v1806 = vld [vmem:[#allocation10 + $0x8] sm:$0xf]
            %v1807 = vld [vmem:[#allocation10 + $0xc] sm:$0xf]
            %v1808 = vld [vmem:[#allocation10 + $0x10] sm:$0xf]
            %v1809 = vld [vmem:[#allocation10 + $0x14] sm:$0xf]
            %v1810 = vld [vmem:[#allocation10 + $0x18] sm:$0xf]
            %v1811 = vld [vmem:[#allocation10 + $0x1c] sm:$0xf]
            %v1812 = vld [vmem:[#allocation10 + $0x20] sm:$0xf]
            %v1813 = vld [vmem:[#allocation10 + $0x24] sm:$0xf]
            %v1814 = vld [vmem:[#allocation10 + $0x28] sm:$0xf]
            %v1815 = vld [vmem:[#allocation10 + $0x2c] sm:$0xf]
            %v1816 = vld [vmem:[#allocation10 + $0x30] sm:$0xf]
            %v1817 = vld [vmem:[#allocation10 + $0x34] sm:$0xf]
            %v1818 = vld [vmem:[#allocation10 + $0x38] sm:$0xf]
            %v1819 = vld [vmem:[#allocation10 + $0x3c] sm:$0xf]
            %v1820 = vld [vmem:[%s9] sm:$0x1]
            %v1822 = vlaneseq
            %v1823 = vshrl.u32 %v1822, 7
            %v1824 = vsub.s32 0, %v1823
            %v1825 = vrot.slane %v1820, %v1824
            %v1843 = vunpack.c.l.b16 %v1804
            %v1844 = vunpack.c.l.b16 %v1805
            %v1845 = vunpack.c.l.b16 %v1806
            %v1846 = vunpack.c.l.b16 %v1807
            %v1847 = vunpack.c.l.b16 %v1808
            %v1848 = vunpack.c.l.b16 %v1809
            %v1849 = vunpack.c.l.b16 %v1810
            %v1850 = vunpack.c.l.b16 %v1811
            %v1851 = vunpack.c.l.b16 %v1812
            %v1852 = vunpack.c.l.b16 %v1813
            %v1853 = vunpack.c.l.b16 %v1814
            %v1854 = vunpack.c.l.b16 %v1815
            %v1855 = vunpack.c.l.b16 %v1816
            %v1856 = vunpack.c.l.b16 %v1817
            %v1857 = vunpack.c.l.b16 %v1818
            %v1858 = vunpack.c.l.b16 %v1819
            %v1859 = vpack.c.b16 %v1844, %v1843
            %v1860 = vpack.c.b16 %v1846, %v1845
            %v1861 = vpack.c.b16 %v1848, %v1847
            %v1862 = vpack.c.b16 %v1850, %v1849
            %v1863 = vpack.c.b16 %v1852, %v1851
            %v1864 = vpack.c.b16 %v1854, %v1853
            %v1865 = vpack.c.b16 %v1856, %v1855
            %v1866 = vpack.c.b16 %v1858, %v1857
            %1875 = vmatprep.subr.bf16.mxu0 0
            %1876 = vmatpush1.bf16.msra.mxu0 %v1866
            %1877 = vmatprep.subr.bf16.mxu0 0
            %1878 = vmatpush1.bf16.msra.mxu0 %v1865
            %1879 = vmatprep.subr.bf16.mxu0 0
            %1880 = vmatpush1.bf16.msra.mxu0 %v1864
            %1881 = vmatprep.subr.bf16.mxu0 0
            %1882 = vmatpush1.bf16.msra.mxu0 %v1863
            %1883 = vmatprep.subr.bf16.mxu0 0
            %1884 = vmatpush1.bf16.msra.mxu0 %v1862
            %1885 = vmatprep.subr.bf16.mxu0 0
            %1886 = vmatpush1.bf16.msra.mxu0 %v1861
            %1887 = vmatprep.subr.bf16.mxu0 0
            %1888 = vmatpush1.bf16.msra.mxu0 %v1860
            %1889 = vmatprep.subr.bf16.mxu0 0
            %1890 = vmatpush1.bf16.msra.mxu0 %v1859
            %1891 = vmatprep.subr.bf16.mxu0 0
            %1892 = vmatpush2.bf16.msra.mxu0 0
            %1893 = vmatprep.subr.bf16.mxu0 0
            %1894 = vmatpush2.bf16.msra.mxu0 0
            %1895 = vmatprep.subr.bf16.mxu0 0
            %1896 = vmatpush2.bf16.msra.mxu0 0
            %1897 = vmatprep.subr.bf16.mxu0 0
            %1898 = vmatpush2.bf16.msra.mxu0 0
            %1899 = vmatprep.subr.bf16.mxu0 0
            %1900 = vmatpush2.bf16.msra.mxu0 0
            %1901 = vmatprep.subr.bf16.mxu0 0
            %1902 = vmatpush2.bf16.msra.mxu0 0
            %1903 = vmatprep.subr.bf16.mxu0 0
            %1904 = vmatpush2.bf16.msra.mxu0 0
            %1905 = vmatprep.subr.bf16.mxu0 0
            %1906 = vmatpush2.bf16.msra.mxu0 0
            %1907 = vmatprep.mubr.bf16.mxu0 0
            %1908 = vmatmul.mubr.bf16.gmra.mxu0 %v1802
            %v1909 = vpop.f32.mrf.mxu0
            %v1910 = vadd.f32 %v1825, %v1909
            %v1911 = vpop.f32.mrf.mxu0
            %v1912 = vpop.f32.mrf.mxu0
            %v1913 = vadd.f32 %v1825, %v1912
            %v1914 = vpop.f32.mrf.mxu0
            %1915 = vmatprep.mubr.bf16.mxu0 0
            %1916 = vmatmul.mubr.bf16.gmra.mxu0 %v1803
            %v1917 = vpop.f32.mrf.mxu0
            %v1918 = vadd.f32 %v1825, %v1917
            %v1919 = vpop.f32.mrf.mxu0
            %v1920 = vpop.f32.mrf.mxu0
            %v1921 = vadd.f32 %v1825, %v1920
            %v1922 = vpop.f32.mrf.mxu0
            %1923 = vdwg.mxu0
            %1924 = vmax.xlane.f32.xlu0 %v1910
            %v1925 = vpop.xlane.xlu0 %1924
            %1926 = vmax.xlane.f32.xlu0 %v1913
            %v1927 = vpop.xlane.xlu0 %1926
            %1928 = vmax.xlane.f32.xlu0 %v1918
            %v1929 = vpop.xlane.xlu0 %1928
            %1930 = vmax.xlane.f32.xlu0 %v1921
            %v1931 = vpop.xlane.xlu0 %1930
            %v1932 = vsub.f32 %v1910, %v1925
            %v1933 = vsub.f32 %v1913, %v1927
            %v1934 = vsub.f32 %v1918, %v1929
            %v1935 = vsub.f32 %v1921, %v1931
            %v1936 = vmul.f32 %v1932, 1.442695
            %v1937 = vpow.pop %v1936
            %v1938 = vmul.f32 %v1933, 1.442695
            %v1939 = vpow.pop %v1938
            %v1940 = vmul.f32 %v1934, 1.442695
            %v1941 = vpow.pop %v1940
            %v1942 = vmul.f32 %v1935, 1.442695
            %v1943 = vpow.pop %v1942
            %1944 = vadd.xlane.f32.xlu0 %v1937
            %v1945 = vpop.xlane.xlu0 %1944
            %1946 = vadd.xlane.f32.xlu0 %v1939
            %v1947 = vpop.xlane.xlu0 %1946
            %1948 = vadd.xlane.f32.xlu0 %v1941
            %v1949 = vpop.xlane.xlu0 %1948
            %1950 = vadd.xlane.f32.xlu0 %v1943
            %v1951 = vpop.xlane.xlu0 %1950
            %v1952 = vlog2.pop %v1945
            %v1953 = vmul.f32 %v1952, 0.6931472
            %v1954 = vlog2.pop %v1947
            %v1955 = vmul.f32 %v1954, 0.6931472
            %v1956 = vlog2.pop %v1949
            %v1957 = vmul.f32 %v1956, 0.6931472
            %v1958 = vlog2.pop %v1951
            %v1959 = vmul.f32 %v1958, 0.6931472
            %v1960 = vsub.f32 %v1932, %v1953
            %v1961 = vsub.f32 %v1933, %v1955
            %v1962 = vsub.f32 %v1934, %v1957
            %v1963 = vsub.f32 %v1935, %v1959
            %1964 = vst [vmem:[%s505] sm:$0xff] %v1960
            %1965 = vst [vmem:[%s505 + $0x8] sm:$0xff] %v1961
            %1966 = vst [vmem:[%s505 + $0x10] sm:$0xff] %v1962
            %1967 = vst [vmem:[%s505 + $0x18] sm:$0xff] %v1963
          $region104: #{tpu_custom_call.1} parent=91 // pred_fallthru
            _
        $region92: #{tpu_custom_call.1} parent=59 // pred_fallthru
          _
        %s1968 = sand.u32 %s294, 1
        %s1969 = scalar_lea.sflag [#allocation6], %s1968
        %s1970 = sand.u32 %s294, 1
        %s1971 = smul.addr %s1970, 32
        %s1972 = scalar_lea.vmem [#allocation12], %s1971
        // Predicated region
        $region105: #{tpu_custom_call.1} parent=59 // pred_check
          %p1973 = pneg %p304
        $region106: #{tpu_custom_call.1} parent=59 // pred_check_branch
          %1975 = sbr.rel (%p1973) target = $region108
        $region107: #{tpu_custom_call.1} parent=59 // pred_region
          %p1976 = scmp.eq.s32.totalorder %s33, 2
          %s1977 = scalar_select %p1976, %s34, 0
          %s1978 = smul.u32 4, %s1977
          %s1980 = ssub.s32 512, 512
          %1981 = vsyncadd %s1969, %s1980
          %s1982 = smul.addr %s1978, 128
          %s1983 = scalar_lea.hbm %s10, %s1982
          %s1984 = sshll.u32 %s1972, 4
          %s1985 = int_to_ptr.vmem [resolvable:$true] %s1984
          %1990 = dma.vmem_to_hbm [thread:$0]  %s1985, 512, %s1983, %s1969, 128, 128, 8
        $region108: #{tpu_custom_call.1} parent=59 // pred_fallthru
          _
      $region60: #{tpu_custom_call.1} parent=5 // pred_fallthru
        _
      %p1991 = scmp.le.s32.totalorder 2, %s24
      // Predicated region
      $region109: #{tpu_custom_call.1} parent=5 // pred_check
        %p1992 = pneg %p1991
      $region110: #{tpu_custom_call.1} parent=5 // pred_check_branch
        %1994 = sbr.rel (%p1992) target = $region112
      $region111: #{tpu_custom_call.1} parent=5 // pred_region
        %s1995 = ssub.s32 %s24, 2
        // Predicated region
        $region113: #{tpu_custom_call.1} parent=111 // pred_check
          %p1996 = pneg %p310
        $region114: #{tpu_custom_call.1} parent=111 // pred_check_branch
          %1998 = sbr.rel (%p1996) target = $region116
        $region115: #{tpu_custom_call.1} parent=111 // pred_region
          %s1999 = sand.u32 %s295, 1
          %s2000 = scalar_lea.sflag [#allocation6], %s1999
          %s2001 = sand.u32 %s295, 1
          %s2002 = smul.addr %s2001, 32
          %s2003 = scalar_lea.vmem [#allocation12], %s2002
          %2004 = dma.done %s2000, 512
        $region116: #{tpu_custom_call.1} parent=111 // pred_fallthru
          _
      $region112: #{tpu_custom_call.1} parent=5 // pred_fallthru
        _
    $region6: #{tpu_custom_call.1} parent=1 // loop_footer
      %s28 = sadd.s32 1, %s24
    $region7: #{tpu_custom_call.1} parent=1 // loop_footer_branch
      %23 = sbr.rel target = $region3
    $region8: #{tpu_custom_call.1} parent=1 // loop_exit
      _
    %2005 = vsyncpa [#allocation5], 1
    %s2006 = scalar_lea.sflag [#allocation5], 1
    %2007 = vsyncpa %s2006, 1
    %2008 = vsyncpa [#allocation8], 1
    %2009 = vsyncpa [#allocation11], 1
    %2010 = vsyncpa [#allocation6], 1
    %s2011 = scalar_lea.sflag [#allocation6], 1
    %2012 = vsyncpa %s2011, 1

</llo_original>
